<compile_context>
chip_gen: v7x
topology: tpu7x:2x2x1
jax: 0.10.0
libtpu: 0.0.40
codegen_flags: <defaults>
</compile_context>

<pallas_src>
import functools

import jax
import jax.numpy as jnp
from jax.experimental import pallas as pl
from jax.experimental.pallas import tpu as pltpu


def _round_up(x, m):
    return ((x + m - 1) // m) * m


# ---------------------------------------------------------------------------
# Fused kernel: edge softmax + GraphConv stack + LPA, all in one VMEM-resident pass
# ---------------------------------------------------------------------------
def fused_gcn_lpa_kernel(mask_ref, vals_ref, feat_ref, w_ref, b_ref,
                         h_out_ref, lab_out_ref, *, layer_dims, n_lpa, slb):
    mask = mask_ref[...]          # [NP, NP] 1.0 on edges, 0.0 elsewhere (incl. padding)
    vals = vals_ref[...]          # [NP, NP] learnable per-edge scalar, 0 on non-edges

    # --- 1) edge softmax over incoming edges (norm_by='dst'): masked row softmax ---------
    masked = jnp.where(mask > 0, vals, jnp.full_like(vals, -1e30))
    m = jnp.max(masked, axis=-1, keepdims=True)
    e = jnp.exp(masked - m) * mask
    s = jnp.sum(e, axis=-1, keepdims=True)
    s_safe = jnp.where(s > 0, s, 1.0)                  # edgeless (padding) rows -> zeros
    a_soft = e * pl.reciprocal(s_safe, approx=True)    # EUP, keeps divide off the VPU
    a_soft_bf = a_soft.astype(jnp.bfloat16)

    # --- 2) GraphConv stack (dropout == identity in eval mode) ---------------------------
    # bf16 MXU operands, f32 accumulation.
    h = feat_ref[...]
    n_layers = len(layer_dims)
    for i, (in_f, out_f) in enumerate(layer_dims):
        w_bf = w_ref[i].astype(jnp.bfloat16)           # [FP, FP]
        b = b_ref[i]                                   # [1, FP]
        h_bf = h.astype(jnp.bfloat16)
        if out_f < in_f:
            # project first when the layer shrinks features: (h @ W), then A @ (hW)
            hw = jnp.dot(h_bf, w_bf, preferred_element_type=jnp.float32)
            out = jnp.dot(a_soft_bf, hw.astype(jnp.bfloat16),
                          preferred_element_type=jnp.float32)
        else:
            agg = jnp.dot(a_soft_bf, h_bf, preferred_element_type=jnp.float32)
            out = jnp.dot(agg.astype(jnp.bfloat16), w_bf,
                          preferred_element_type=jnp.float32)
        out = out + b
        if i != n_layers - 1:
            out = jnp.maximum(out, 0.0)                # ReLU on all but the last layer
        h = out
    h_out_ref[...] = h.astype(h_out_ref.dtype)

    # --- 3) LPA with the RAW lpa_adj on (detached) h --------------------------------------
    # Kept in f32: repeated multiplication by the un-normalized adjacency is numerically
    # delicate, and the matrices are tiny at these sizes.
    a_raw = vals * mask
    if slb == 0.0:
        lab = h
        for _ in range(n_lpa):
            lab = jnp.dot(a_raw, lab, preferred_element_type=jnp.float32)
    else:
        # reference loop never updates `labels`, so all n_lpa iterations are identical
        prop = jnp.dot(a_raw, h, preferred_element_type=jnp.float32)
        lab = (1.0 - slb) * prop + slb * h
    lab_out_ref[...] = lab.astype(lab_out_ref.dtype)


# ---------------------------------------------------------------------------
# Host-side wrapper: pad to lane-dense shapes, launch one fused kernel, slice back
# ---------------------------------------------------------------------------
def gcn_lpa_forward(mask, lpa_vals_dense, features, weights, biases, n_lpa, slb):
    n = features.shape[0]
    in_feats = features.shape[1]
    layer_dims = tuple((int(w.shape[0]), int(w.shape[1])) for w in weights)
    n_classes = layer_dims[-1][1]
    num_layers = len(weights)

    # Pad node dim and all feature dims to multiples of 128 (zero padding is semantics-
    # preserving: padded rows have no edges, padded feature cols stay exactly zero).
    np_ = _round_up(n, 128)
    fp = _round_up(max([in_feats] + [d for dims in layer_dims for d in dims]), 128)

    mask_p = jnp.zeros((np_, np_), jnp.float32).at[:n, :n].set(mask)
    vals_p = jnp.zeros((np_, np_), jnp.float32).at[:n, :n].set(lpa_vals_dense)
    feat_p = jnp.zeros((np_, fp), jnp.float32).at[:n, :in_feats].set(features)

    w_stack = jnp.zeros((num_layers, fp, fp), jnp.float32)
    b_stack = jnp.zeros((num_layers, 1, fp), jnp.float32)
    for i, (w, b) in enumerate(zip(weights, biases)):
        w_stack = w_stack.at[i, :w.shape[0], :w.shape[1]].set(w)
        b_stack = b_stack.at[i, 0, :b.shape[0]].set(b)

    kernel = functools.partial(fused_gcn_lpa_kernel,
                               layer_dims=layer_dims, n_lpa=int(n_lpa), slb=float(slb))

    h_p, lab_p = pl.pallas_call(
        kernel,
        out_shape=(
            jax.ShapeDtypeStruct((np_, fp), jnp.float32),
            jax.ShapeDtypeStruct((np_, fp), jnp.float32),
        ),
        grid=(1,),
        in_specs=[
            pl.BlockSpec((np_, np_), lambda i: (0, 0)),            # mask
            pl.BlockSpec((np_, np_), lambda i: (0, 0)),            # lpa edge values (dense)
            pl.BlockSpec((np_, fp), lambda i: (0, 0)),             # features
            pl.BlockSpec((num_layers, fp, fp), lambda i: (0, 0, 0)),   # stacked weights
            pl.BlockSpec((num_layers, 1, fp), lambda i: (0, 0, 0)),    # stacked biases
        ],
        out_specs=(
            pl.BlockSpec((np_, fp), lambda i: (0, 0)),
            pl.BlockSpec((np_, fp), lambda i: (0, 0)),
        ),
        compiler_params=pltpu.CompilerParams(dimension_semantics=("arbitrary",)),
    )(mask_p, vals_p, feat_p, w_stack, b_stack)

    # slice the zero padding off (lane-dense stores happened inside the kernel)
    h = h_p[:n, :n_classes]
    labels = lab_p[:n, :n_classes]   # LPA runs on h "detached"; forward-only so no-op here
    return h, labels


def xavier_uniform(key, shape, fan_in, fan_out):
    bound = (6.0 / (fan_in + fan_out)) ** 0.5
    return jax.random.uniform(key, shape, jnp.float32, -bound, bound)


if __name__ == "__main__":
    # small, module-consistent shapes
    N = 64          # number of nodes
    in_feats = 16
    n_hidden = 32
    n_classes = 8
    n_layers = 2    # -> 3 GraphConv layers total (in->hid, hid->hid, hid->classes)
    n_lpa = 10
    slb = 0.1

    key = jax.random.PRNGKey(0)
    k_graph, k_feat, k_adj, k_w0, k_w1, k_w2 = jax.random.split(key, 6)

    # random graph (dense mask [dst, src]) with self-loops so every node has an in-edge
    mask = jax.random.bernoulli(k_graph, 0.15, (N, N)).astype(jnp.float32)
    mask = jnp.maximum(mask, jnp.eye(N, dtype=jnp.float32))

    # lpa_adj parameter: one learnable scalar per edge, xavier_uniform((E, 1)),
    # scattered into a dense [N_dst, N_src] matrix (zeros on non-edges).
    dsts, srcs = jnp.nonzero(mask)
    E = int(dsts.shape[0])
    lpa_edge_vals = xavier_uniform(k_adj, (E,), fan_in=1, fan_out=E)
    lpa_vals_dense = jnp.zeros((N, N), jnp.float32).at[dsts, srcs].set(lpa_edge_vals)

    # GraphConv parameters (xavier uniform weights, zero biases)
    dims = [(in_feats, n_hidden)] + [(n_hidden, n_hidden)] * (n_layers - 1) + [(n_hidden, n_classes)]
    wkeys = [k_w0, k_w1, k_w2]
    weights = [xavier_uniform(wkeys[i], dims[i], dims[i][0], dims[i][1]) for i in range(len(dims))]
    biases = [jnp.zeros((dims[i][1],), jnp.float32) for i in range(len(dims))]

    features = jax.random.normal(k_feat, (N, in_feats), jnp.float32)

    h, labels = gcn_lpa_forward(mask, lpa_vals_dense, features, weights, biases, n_lpa, slb)
    jax.block_until_ready(h)
    jax.block_until_ready(labels)

    assert h.shape == (N, n_classes) and labels.shape == (N, n_classes)
    assert bool(jnp.all(jnp.isfinite(h))) and bool(jnp.all(jnp.isfinite(labels)))
    print("KERNEL_OK")
</pallas_src>

<mosaic_0001>
module attributes {stable_mosaic.version = 11 : i64} {
  func.func @fused_gcn_lpa_kernel(%arg0: i32, %arg1: memref<128x128xf32, #tpu.memory_space<vmem>>, %arg2: memref<128x128xf32, #tpu.memory_space<vmem>>, %arg3: memref<128x128xf32, #tpu.memory_space<vmem>>, %arg4: memref<3x128x128xf32, #tpu.memory_space<vmem>>, %arg5: memref<3x1x128xf32, #tpu.memory_space<vmem>>, %arg6: memref<128x128xf32, #tpu.memory_space<vmem>>, %arg7: memref<128x128xf32, #tpu.memory_space<vmem>>) attributes {dimension_semantics = [#tpu.dimension_semantics<arbitrary>], iteration_bounds = array<i64: 1>, scalar_prefetch = 0 : i64, scratch_operands = 0 : i64, tpu.core_type = #tpu.core_type<tc>, window_params = [{pipeline_mode = #tpu.pipeline_mode<synchronous>, transform_indices = @transform_0, window_bounds = array<i64: 128, 128>}, {pipeline_mode = #tpu.pipeline_mode<synchronous>, transform_indices = @transform_1, window_bounds = array<i64: 128, 128>}, {pipeline_mode = #tpu.pipeline_mode<synchronous>, transform_indices = @transform_2, window_bounds = array<i64: 128, 128>}, {pipeline_mode = #tpu.pipeline_mode<synchronous>, transform_indices = @transform_3, window_bounds = array<i64: 3, 128, 128>}, {pipeline_mode = #tpu.pipeline_mode<synchronous>, transform_indices = @transform_4, window_bounds = array<i64: 3, 1, 128>}, {pipeline_mode = #tpu.pipeline_mode<synchronous>, transform_indices = @transform_5, window_bounds = array<i64: 128, 128>}, {pipeline_mode = #tpu.pipeline_mode<synchronous>, transform_indices = @transform_6, window_bounds = array<i64: 128, 128>}]} {
    %c0 = arith.constant 0 : index
    %c0_0 = arith.constant 0 : index
    %0 = vector.load %arg1[%c0, %c0_0] : memref<128x128xf32, #tpu.memory_space<vmem>>, vector<128x128xf32>
    %c0_1 = arith.constant 0 : index
    %c0_2 = arith.constant 0 : index
    %1 = vector.load %arg2[%c0_1, %c0_2] : memref<128x128xf32, #tpu.memory_space<vmem>>, vector<128x128xf32>
    %cst = arith.constant 0.000000e+00 : f32
    %2 = vector.broadcast %cst : f32 to vector<128x128xf32>
    %3 = arith.cmpf ogt, %0, %2 : vector<128x128xf32>
    %cst_3 = arith.constant -1.000000e+30 : f32
    %4 = vector.broadcast %cst_3 : f32 to vector<128x128xf32>
    %5 = arith.select %3, %1, %4 : vector<128x128xi1>, vector<128x128xf32>
    %cst_4 = arith.constant dense<0xFF800000> : vector<128xf32>
    %6 = vector.multi_reduction <maximumf>, %5, %cst_4 [1] : vector<128x128xf32> to vector<128xf32>
    %7 = vector.shape_cast %6 : vector<128xf32> to vector<128x1xf32>
    %8 = vector.broadcast %7 : vector<128x1xf32> to vector<128x128xf32>
    %9 = arith.subf %5, %8 : vector<128x128xf32>
    %10 = math.exp %9 : vector<128x128xf32>
    %11 = arith.mulf %10, %0 : vector<128x128xf32>
    %cst_5 = arith.constant dense<0.000000e+00> : vector<128xf32>
    %12 = vector.multi_reduction <add>, %11, %cst_5 [1] : vector<128x128xf32> to vector<128xf32>
    %13 = vector.shape_cast %12 : vector<128xf32> to vector<128x1xf32>
    %cst_6 = arith.constant 0.000000e+00 : f32
    %14 = vector.broadcast %cst_6 : f32 to vector<128x1xf32>
    %15 = arith.cmpf ogt, %13, %14 : vector<128x1xf32>
    %cst_7 = arith.constant 1.000000e+00 : f32
    %16 = vector.broadcast %cst_7 : f32 to vector<128x1xf32>
    %17 = arith.select %15, %13, %16 : vector<128x1xi1>, vector<128x1xf32>
    %18 = tpu.reciprocal %17 {approx = true} : vector<128x1xf32> -> vector<128x1xf32>
    %19 = vector.broadcast %18 : vector<128x1xf32> to vector<128x128xf32>
    %20 = arith.mulf %11, %19 : vector<128x128xf32>
    %21 = arith.truncf %20 : vector<128x128xf32> to vector<128x128xbf16>
    %c0_8 = arith.constant 0 : index
    %c0_9 = arith.constant 0 : index
    %22 = vector.load %arg3[%c0_8, %c0_9] : memref<128x128xf32, #tpu.memory_space<vmem>>, vector<128x128xf32>
    %c0_10 = arith.constant 0 : index
    %c0_11 = arith.constant 0 : index
    %c0_12 = arith.constant 0 : index
    %23 = vector.load %arg4[%c0_10, %c0_11, %c0_12] : memref<3x128x128xf32, #tpu.memory_space<vmem>>, vector<1x128x128xf32>
    %24 = vector.shape_cast %23 : vector<1x128x128xf32> to vector<128x128xf32>
    %25 = arith.truncf %24 : vector<128x128xf32> to vector<128x128xbf16>
    %c0_13 = arith.constant 0 : index
    %c0_14 = arith.constant 0 : index
    %c0_15 = arith.constant 0 : index
    %26 = vector.load %arg5[%c0_13, %c0_14, %c0_15] : memref<3x1x128xf32, #tpu.memory_space<vmem>>, vector<1x1x128xf32>
    %27 = vector.shape_cast %26 : vector<1x1x128xf32> to vector<1x128xf32>
    %28 = arith.truncf %22 : vector<128x128xf32> to vector<128x128xbf16>
    %cst_16 = arith.constant dense<0.000000e+00> : vector<128x128xf32>
    %29 = tpu.matmul %21, %28, %cst_16 {dimension_numbers = #tpu.dot_dimension_numbers<[1], [0], [0], [1], [0, 0, 1, 1], [], []>} : vector<128x128xbf16>, vector<128x128xbf16>, vector<128x128xf32> -> vector<128x128xf32>
    %30 = arith.truncf %29 : vector<128x128xf32> to vector<128x128xbf16>
    %cst_17 = arith.constant dense<0.000000e+00> : vector<128x128xf32>
    %31 = tpu.matmul %30, %25, %cst_17 {dimension_numbers = #tpu.dot_dimension_numbers<[1], [0], [0], [1], [0, 0, 1, 1], [], []>} : vector<128x128xbf16>, vector<128x128xbf16>, vector<128x128xf32> -> vector<128x128xf32>
    %32 = vector.broadcast %27 : vector<1x128xf32> to vector<128x128xf32>
    %33 = arith.addf %31, %32 : vector<128x128xf32>
    %cst_18 = arith.constant 0.000000e+00 : f32
    %34 = vector.broadcast %cst_18 : f32 to vector<128x128xf32>
    %35 = arith.maximumf %33, %34 : vector<128x128xf32>
    %c1 = arith.constant 1 : index
    %c0_19 = arith.constant 0 : index
    %c0_20 = arith.constant 0 : index
    %36 = vector.load %arg4[%c1, %c0_19, %c0_20] : memref<3x128x128xf32, #tpu.memory_space<vmem>>, vector<1x128x128xf32>
    %37 = vector.shape_cast %36 : vector<1x128x128xf32> to vector<128x128xf32>
    %38 = arith.truncf %37 : vector<128x128xf32> to vector<128x128xbf16>
    %c1_21 = arith.constant 1 : index
    %c0_22 = arith.constant 0 : index
    %c0_23 = arith.constant 0 : index
    %39 = vector.load %arg5[%c1_21, %c0_22, %c0_23] : memref<3x1x128xf32, #tpu.memory_space<vmem>>, vector<1x1x128xf32>
    %40 = vector.shape_cast %39 : vector<1x1x128xf32> to vector<1x128xf32>
    %41 = arith.truncf %35 : vector<128x128xf32> to vector<128x128xbf16>
    %cst_24 = arith.constant dense<0.000000e+00> : vector<128x128xf32>
    %42 = tpu.matmul %21, %41, %cst_24 {dimension_numbers = #tpu.dot_dimension_numbers<[1], [0], [0], [1], [0, 0, 1, 1], [], []>} : vector<128x128xbf16>, vector<128x128xbf16>, vector<128x128xf32> -> vector<128x128xf32>
    %43 = arith.truncf %42 : vector<128x128xf32> to vector<128x128xbf16>
    %cst_25 = arith.constant dense<0.000000e+00> : vector<128x128xf32>
    %44 = tpu.matmul %43, %38, %cst_25 {dimension_numbers = #tpu.dot_dimension_numbers<[1], [0], [0], [1], [0, 0, 1, 1], [], []>} : vector<128x128xbf16>, vector<128x128xbf16>, vector<128x128xf32> -> vector<128x128xf32>
    %45 = vector.broadcast %40 : vector<1x128xf32> to vector<128x128xf32>
    %46 = arith.addf %44, %45 : vector<128x128xf32>
    %cst_26 = arith.constant 0.000000e+00 : f32
    %47 = vector.broadcast %cst_26 : f32 to vector<128x128xf32>
    %48 = arith.maximumf %46, %47 : vector<128x128xf32>
    %c2 = arith.constant 2 : index
    %c0_27 = arith.constant 0 : index
    %c0_28 = arith.constant 0 : index
    %49 = vector.load %arg4[%c2, %c0_27, %c0_28] : memref<3x128x128xf32, #tpu.memory_space<vmem>>, vector<1x128x128xf32>
    %50 = vector.shape_cast %49 : vector<1x128x128xf32> to vector<128x128xf32>
    %51 = arith.truncf %50 : vector<128x128xf32> to vector<128x128xbf16>
    %c2_29 = arith.constant 2 : index
    %c0_30 = arith.constant 0 : index
    %c0_31 = arith.constant 0 : index
    %52 = vector.load %arg5[%c2_29, %c0_30, %c0_31] : memref<3x1x128xf32, #tpu.memory_space<vmem>>, vector<1x1x128xf32>
    %53 = vector.shape_cast %52 : vector<1x1x128xf32> to vector<1x128xf32>
    %54 = arith.truncf %48 : vector<128x128xf32> to vector<128x128xbf16>
    %cst_32 = arith.constant dense<0.000000e+00> : vector<128x128xf32>
    %55 = tpu.matmul %54, %51, %cst_32 {dimension_numbers = #tpu.dot_dimension_numbers<[1], [0], [0], [1], [0, 0, 1, 1], [], []>} : vector<128x128xbf16>, vector<128x128xbf16>, vector<128x128xf32> -> vector<128x128xf32>
    %56 = arith.truncf %55 : vector<128x128xf32> to vector<128x128xbf16>
    %cst_33 = arith.constant dense<0.000000e+00> : vector<128x128xf32>
    %57 = tpu.matmul %21, %56, %cst_33 {dimension_numbers = #tpu.dot_dimension_numbers<[1], [0], [0], [1], [0, 0, 1, 1], [], []>} : vector<128x128xbf16>, vector<128x128xbf16>, vector<128x128xf32> -> vector<128x128xf32>
    %58 = vector.broadcast %53 : vector<1x128xf32> to vector<128x128xf32>
    %59 = arith.addf %57, %58 : vector<128x128xf32>
    %c0_34 = arith.constant 0 : index
    %c0_35 = arith.constant 0 : index
    %60 = vector.load %arg6[%c0_34, %c0_35] : memref<128x128xf32, #tpu.memory_space<vmem>>, vector<128x128xf32>
    tpu.vector_store %arg6[%c0_34, %c0_35], %59 {strides = array<i32>} : memref<128x128xf32, #tpu.memory_space<vmem>>, vector<128x128xf32>,
    %61 = arith.mulf %1, %0 : vector<128x128xf32>
    %cst_36 = arith.constant dense<0.000000e+00> : vector<128x128xf32>
    %62 = tpu.matmul %61, %59, %cst_36 {dimension_numbers = #tpu.dot_dimension_numbers<[1], [0], [0], [1], [0, 0, 1, 1], [], []>} : vector<128x128xf32>, vector<128x128xf32>, vector<128x128xf32> -> vector<128x128xf32>
    %cst_37 = arith.constant 0.899999976 : f32
    %63 = vector.broadcast %cst_37 : f32 to vector<128x128xf32>
    %64 = arith.mulf %63, %62 : vector<128x128xf32>
    %cst_38 = arith.constant 1.000000e-01 : f32
    %65 = vector.broadcast %cst_38 : f32 to vector<128x128xf32>
    %66 = arith.mulf %65, %59 : vector<128x128xf32>
    %67 = arith.addf %64, %66 : vector<128x128xf32>
    %c0_39 = arith.constant 0 : index
    %c0_40 = arith.constant 0 : index
    %68 = vector.load %arg7[%c0_39, %c0_40] : memref<128x128xf32, #tpu.memory_space<vmem>>, vector<128x128xf32>
    tpu.vector_store %arg7[%c0_39, %c0_40], %67 {strides = array<i32>} : memref<128x128xf32, #tpu.memory_space<vmem>>, vector<128x128xf32>,
    return
  }
  func.func @transform_0(%arg0: i32) -> (i32, i32) {
    %c0_i32 = arith.constant 0 : i32
    %c0_i32_0 = arith.constant 0 : i32
    %c0_i32_1 = arith.constant 0 : i32
    return %c0_i32, %c0_i32_0 : i32, i32
  }
  func.func @transform_1(%arg0: i32) -> (i32, i32) {
    %c0_i32 = arith.constant 0 : i32
    %c0_i32_0 = arith.constant 0 : i32
    %c0_i32_1 = arith.constant 0 : i32
    return %c0_i32, %c0_i32_0 : i32, i32
  }
  func.func @transform_2(%arg0: i32) -> (i32, i32) {
    %c0_i32 = arith.constant 0 : i32
    %c0_i32_0 = arith.constant 0 : i32
    %c0_i32_1 = arith.constant 0 : i32
    return %c0_i32, %c0_i32_0 : i32, i32
  }
  func.func @transform_3(%arg0: i32) -> (i32, i32, i32) {
    %c0_i32 = arith.constant 0 : i32
    %c0_i32_0 = arith.constant 0 : i32
    %c0_i32_1 = arith.constant 0 : i32
    %c0_i32_2 = arith.constant 0 : i32
    return %c0_i32, %c0_i32_0, %c0_i32_1 : i32, i32, i32
  }
  func.func @transform_4(%arg0: i32) -> (i32, i32, i32) {
    %c0_i32 = arith.constant 0 : i32
    %c0_i32_0 = arith.constant 0 : i32
    %c0_i32_1 = arith.constant 0 : i32
    %c0_i32_2 = arith.constant 0 : i32
    return %c0_i32, %c0_i32_0, %c0_i32_1 : i32, i32, i32
  }
  func.func @transform_5(%arg0: i32) -> (i32, i32) {
    %c0_i32 = arith.constant 0 : i32
    %c0_i32_0 = arith.constant 0 : i32
    %c0_i32_1 = arith.constant 0 : i32
    return %c0_i32, %c0_i32_0 : i32, i32
  }
  func.func @transform_6(%arg0: i32) -> (i32, i32) {
    %c0_i32 = arith.constant 0 : i32
    %c0_i32_0 = arith.constant 0 : i32
    %c0_i32_1 = arith.constant 0 : i32
    return %c0_i32, %c0_i32_0 : i32, i32
  }
}

</mosaic_0001>

<llo_original>
// kernel: tpu_custom_call.1
$region0: #{tpu_custom_call.1}
  #allocation0 [shape = 'u32[]', space=smem, size = 0x4, offset = 0x4, fixed_abs, tag = 'smem constant byte address 0x4 - core index']
  #allocation1 [shape = 'u32[144,128]{1,0:T(1,128)}', space=vmem, size = 0x12000, scoped, tag = 'internal scratch']
  %s0 = inlined_call_operand.hbm [shape: f32[128,128], index: 0, kind: input, shape index: {}]
  %s1 = inlined_call_operand.hbm [shape: f32[128,128], index: 1, kind: input, shape index: {}]
  %s2 = inlined_call_operand.hbm [shape: f32[128,128], index: 2, kind: input, shape index: {}]
  %s3 = inlined_call_operand.hbm [shape: f32[3,128,128], index: 3, kind: input, shape index: {}]
  %s4 = inlined_call_operand.vmem [shape: f32[3,1,128], index: 4, kind: input, shape index: {}]
  %s5 = inlined_call_operand.hbm [shape: f32[128,128], index: 5, kind: output, shape index: {0}]
  %s6 = inlined_call_operand.hbm [shape: f32[128,128], index: 6, kind: output, shape index: {1}]
  %7 = xla_tuple %s5, %s6
  %s8 = sld [smem:[#allocation0]]
  $region54: #{tpu_custom_call.1} parent=0
    _
  %s10 = ssub.s32 1, %s8
  %s11 = scalar_select 0, %s10, %s8
  $region1: #{tpu_custom_call.1} parent=0
    #allocation2 [shape = 'u8[65536]{0}', space=vmem, size = 0x10000, scoped, tag = 'input window, operand 0, single buffered']
    #allocation3 [shape = 's32[1]{0}', space=sflag, size = 0x4, scoped, tag = 'scoped memory for tpu_custom_call.1']
    #allocation4 [shape = 's32[1]{0}', space=sflag, size = 0x4, scoped, tag = 'scoped memory for tpu_custom_call.1']
    #allocation5 [shape = 'u8[65536]{0}', space=vmem, size = 0x10000, scoped, tag = 'input window, operand 1, single buffered']
    #allocation6 [shape = 's32[1]{0}', space=sflag, size = 0x4, scoped, tag = 'scoped memory for tpu_custom_call.1']
    #allocation7 [shape = 'u8[65536]{0}', space=vmem, size = 0x10000, scoped, tag = 'input window, operand 2, single buffered']
    #allocation8 [shape = 'u8[196608]{0}', space=vmem, size = 0x30000, scoped, tag = 'input window, operand 3, single buffered']
    #allocation9 [shape = 's32[1]{0}', space=sflag, size = 0x4, scoped, tag = 'scoped memory for tpu_custom_call.1']
    #allocation10 [shape = 'u8[65536]{0}', space=vmem, size = 0x10000, scoped, tag = 'output window, operand 0, single buffered']
    #allocation11 [shape = 'u8[65536]{0}', space=vmem, size = 0x10000, scoped, tag = 'output window, operand 1, single buffered']
    #allocation12 [shape = 's32[1]{0}', space=sflag, size = 0x4, scoped, tag = 'scoped memory for tpu_custom_call.1']
    %12 = vsyncpa [#allocation3], 0
    %13 = vsyncpa [#allocation6], 0
    %14 = vsyncpa [#allocation9], 0
    %15 = vsyncpa [#allocation4], 0
    %16 = vsyncpa [#allocation12], 0
    // Predicated region
    $region2: #{tpu_custom_call.1} parent=1 // pred_check
      _
    $region3: #{tpu_custom_call.1} parent=1 // pred_check_branch
      %18 = sbr.rel (0) target = $region5
    $region4: #{tpu_custom_call.1} parent=1 // pred_region
      %s20 = ssub.s32 2048, 2048
      %21 = vsyncadd [#allocation3], %s20
      %s22 = sshll.u32 [#allocation2], 4
      %s23 = int_to_ptr.vmem [resolvable:$true] %s22
      %28 = dma.hbm_to_vmem [thread:$0]  %s0, 2048, %s23, [#allocation3], 128, 128, 8
    $region5: #{tpu_custom_call.1} parent=1 // pred_fallthru
      _
    // Predicated region
    $region6: #{tpu_custom_call.1} parent=1 // pred_check
      _
    $region7: #{tpu_custom_call.1} parent=1 // pred_check_branch
      %30 = sbr.rel (0) target = $region9
    $region8: #{tpu_custom_call.1} parent=1 // pred_region
      %s32 = ssub.s32 2048, 2048
      %33 = vsyncadd [#allocation6], %s32
      %s34 = sshll.u32 [#allocation5], 4
      %s35 = int_to_ptr.vmem [resolvable:$true] %s34
      %40 = dma.hbm_to_vmem [thread:$0]  %s1, 2048, %s35, [#allocation6], 128, 128, 8
    $region9: #{tpu_custom_call.1} parent=1 // pred_fallthru
      _
    // Predicated region
    $region10: #{tpu_custom_call.1} parent=1 // pred_check
      _
    $region11: #{tpu_custom_call.1} parent=1 // pred_check_branch
      %42 = sbr.rel (0) target = $region13
    $region12: #{tpu_custom_call.1} parent=1 // pred_region
      %s44 = ssub.s32 2048, 2048
      %45 = vsyncadd [#allocation6], %s44
      %s46 = sshll.u32 [#allocation7], 4
      %s47 = int_to_ptr.vmem [resolvable:$true] %s46
      %52 = dma.hbm_to_vmem [thread:$0]  %s2, 2048, %s47, [#allocation6], 128, 128, 8
    $region13: #{tpu_custom_call.1} parent=1 // pred_fallthru
      _
    // Predicated region
    $region14: #{tpu_custom_call.1} parent=1 // pred_check
      _
    $region15: #{tpu_custom_call.1} parent=1 // pred_check_branch
      %54 = sbr.rel (0) target = $region17
    $region16: #{tpu_custom_call.1} parent=1 // pred_region
      %s56 = ssub.s32 6144, 6144
      %57 = vsyncadd [#allocation9], %s56
      %s58 = sshll.u32 [#allocation8], 4
      %s59 = int_to_ptr.vmem [resolvable:$true] %s58
      %64 = dma.hbm_to_vmem [thread:$0]  %s3, 6144, %s59, [#allocation9], 128, 128, 8
    $region17: #{tpu_custom_call.1} parent=1 // pred_fallthru
      _
    // Predicated region
    $region18: #{tpu_custom_call.1} parent=1 // pred_check
      _
    $region19: #{tpu_custom_call.1} parent=1 // pred_check_branch
      %66 = sbr.rel (0) target = $region21
    $region20: #{tpu_custom_call.1} parent=1 // pred_region
      _
    $region21: #{tpu_custom_call.1} parent=1 // pred_fallthru
      _
    // Predicated region
    $region22: #{tpu_custom_call.1} parent=1 // pred_check
      _
    $region23: #{tpu_custom_call.1} parent=1 // pred_check_branch
      %68 = sbr.rel (0) target = $region25
    $region24: #{tpu_custom_call.1} parent=1 // pred_region
      %69 = dma.done [#allocation3], 2048
    $region25: #{tpu_custom_call.1} parent=1 // pred_fallthru
      _
    // Predicated region
    $region26: #{tpu_custom_call.1} parent=1 // pred_check
      _
    $region27: #{tpu_custom_call.1} parent=1 // pred_check_branch
      %71 = sbr.rel (0) target = $region29
    $region28: #{tpu_custom_call.1} parent=1 // pred_region
      %72 = dma.done [#allocation6], 2048
    $region29: #{tpu_custom_call.1} parent=1 // pred_fallthru
      _
    // Predicated region
    $region30: #{tpu_custom_call.1} parent=1 // pred_check
      _
    $region31: #{tpu_custom_call.1} parent=1 // pred_check_branch
      %74 = sbr.rel (0) target = $region33
    $region32: #{tpu_custom_call.1} parent=1 // pred_region
      %75 = dma.done [#allocation6], 2048
    $region33: #{tpu_custom_call.1} parent=1 // pred_fallthru
      _
    // Predicated region
    $region34: #{tpu_custom_call.1} parent=1 // pred_check
      _
    $region35: #{tpu_custom_call.1} parent=1 // pred_check_branch
      %77 = sbr.rel (0) target = $region37
    $region36: #{tpu_custom_call.1} parent=1 // pred_region
      %78 = dma.done [#allocation9], 6144
    $region37: #{tpu_custom_call.1} parent=1 // pred_fallthru
      _
    %v80 = vld [vmem:[#allocation2] sm:$0xff]
    %v81 = vld [vmem:[#allocation2 + $0x8] sm:$0xff]
    %v82 = vld [vmem:[#allocation2 + $0x10] sm:$0xff]
    %v83 = vld [vmem:[#allocation2 + $0x18] sm:$0xff]
    %v84 = vld [vmem:[#allocation2 + $0x20] sm:$0xff]
    %v85 = vld [vmem:[#allocation2 + $0x28] sm:$0xff]
    %v86 = vld [vmem:[#allocation2 + $0x30] sm:$0xff]
    %v87 = vld [vmem:[#allocation2 + $0x38] sm:$0xff]
    %v88 = vld [vmem:[#allocation2 + $0x40] sm:$0xff]
    %v89 = vld [vmem:[#allocation2 + $0x48] sm:$0xff]
    %v90 = vld [vmem:[#allocation2 + $0x50] sm:$0xff]
    %v91 = vld [vmem:[#allocation2 + $0x58] sm:$0xff]
    %v92 = vld [vmem:[#allocation2 + $0x60] sm:$0xff]
    %v93 = vld [vmem:[#allocation2 + $0x68] sm:$0xff]
    %v94 = vld [vmem:[#allocation2 + $0x70] sm:$0xff]
    %v95 = vld [vmem:[#allocation2 + $0x78] sm:$0xff]
    %v96 = vld [vmem:[#allocation5] sm:$0xff]
    %v97 = vld [vmem:[#allocation5 + $0x8] sm:$0xff]
    %v98 = vld [vmem:[#allocation5 + $0x10] sm:$0xff]
    %v99 = vld [vmem:[#allocation5 + $0x18] sm:$0xff]
    %v100 = vld [vmem:[#allocation5 + $0x20] sm:$0xff]
    %v101 = vld [vmem:[#allocation5 + $0x28] sm:$0xff]
    %v102 = vld [vmem:[#allocation5 + $0x30] sm:$0xff]
    %v103 = vld [vmem:[#allocation5 + $0x38] sm:$0xff]
    %v104 = vld [vmem:[#allocation5 + $0x40] sm:$0xff]
    %v105 = vld [vmem:[#allocation5 + $0x48] sm:$0xff]
    %v106 = vld [vmem:[#allocation5 + $0x50] sm:$0xff]
    %v107 = vld [vmem:[#allocation5 + $0x58] sm:$0xff]
    %v108 = vld [vmem:[#allocation5 + $0x60] sm:$0xff]
    %v109 = vld [vmem:[#allocation5 + $0x68] sm:$0xff]
    %v110 = vld [vmem:[#allocation5 + $0x70] sm:$0xff]
    %v111 = vld [vmem:[#allocation5 + $0x78] sm:$0xff]
    %vm112 = vcmp.gt.f32.partialorder %v80, 0.0
    %vm113 = vcmp.gt.f32.partialorder %v81, 0.0
    %vm114 = vcmp.gt.f32.partialorder %v82, 0.0
    %vm115 = vcmp.gt.f32.partialorder %v83, 0.0
    %vm116 = vcmp.gt.f32.partialorder %v84, 0.0
    %vm117 = vcmp.gt.f32.partialorder %v85, 0.0
    %vm118 = vcmp.gt.f32.partialorder %v86, 0.0
    %vm119 = vcmp.gt.f32.partialorder %v87, 0.0
    %vm120 = vcmp.gt.f32.partialorder %v88, 0.0
    %vm121 = vcmp.gt.f32.partialorder %v89, 0.0
    %vm122 = vcmp.gt.f32.partialorder %v90, 0.0
    %vm123 = vcmp.gt.f32.partialorder %v91, 0.0
    %vm124 = vcmp.gt.f32.partialorder %v92, 0.0
    %vm125 = vcmp.gt.f32.partialorder %v93, 0.0
    %vm126 = vcmp.gt.f32.partialorder %v94, 0.0
    %vm127 = vcmp.gt.f32.partialorder %v95, 0.0
    %v128 = vsel %vm112, %v96, -1e+30
    %v129 = vsel %vm113, %v97, -1e+30
    %v130 = vsel %vm114, %v98, -1e+30
    %v131 = vsel %vm115, %v99, -1e+30
    %v132 = vsel %vm116, %v100, -1e+30
    %v133 = vsel %vm117, %v101, -1e+30
    %v134 = vsel %vm118, %v102, -1e+30
    %v135 = vsel %vm119, %v103, -1e+30
    %v136 = vsel %vm120, %v104, -1e+30
    %v137 = vsel %vm121, %v105, -1e+30
    %v138 = vsel %vm122, %v106, -1e+30
    %v139 = vsel %vm123, %v107, -1e+30
    %v140 = vsel %vm124, %v108, -1e+30
    %v141 = vsel %vm125, %v109, -1e+30
    %v142 = vsel %vm126, %v110, -1e+30
    %v143 = vsel %vm127, %v111, -1e+30
    %144 = vmax.xlane.f32.xlu0 %v128
    %v145 = vpop.xlane.xlu0 %144
    %146 = vmax.xlane.f32.xlu0 %v129
    %v147 = vpop.xlane.xlu0 %146
    %148 = vmax.xlane.f32.xlu0 %v130
    %v149 = vpop.xlane.xlu0 %148
    %150 = vmax.xlane.f32.xlu0 %v131
    %v151 = vpop.xlane.xlu0 %150
    %152 = vmax.xlane.f32.xlu0 %v132
    %v153 = vpop.xlane.xlu0 %152
    %154 = vmax.xlane.f32.xlu0 %v133
    %v155 = vpop.xlane.xlu0 %154
    %156 = vmax.xlane.f32.xlu0 %v134
    %v157 = vpop.xlane.xlu0 %156
    %158 = vmax.xlane.f32.xlu0 %v135
    %v159 = vpop.xlane.xlu0 %158
    %160 = vmax.xlane.f32.xlu0 %v136
    %v161 = vpop.xlane.xlu0 %160
    %162 = vmax.xlane.f32.xlu0 %v137
    %v163 = vpop.xlane.xlu0 %162
    %164 = vmax.xlane.f32.xlu0 %v138
    %v165 = vpop.xlane.xlu0 %164
    %166 = vmax.xlane.f32.xlu0 %v139
    %v167 = vpop.xlane.xlu0 %166
    %168 = vmax.xlane.f32.xlu0 %v140
    %v169 = vpop.xlane.xlu0 %168
    %170 = vmax.xlane.f32.xlu0 %v141
    %v171 = vpop.xlane.xlu0 %170
    %172 = vmax.xlane.f32.xlu0 %v142
    %v173 = vpop.xlane.xlu0 %172
    %174 = vmax.xlane.f32.xlu0 %v143
    %v175 = vpop.xlane.xlu0 %174
    %v176 = vsub.f32 %v128, %v145
    %v177 = vsub.f32 %v129, %v147
    %v178 = vsub.f32 %v130, %v149
    %v179 = vsub.f32 %v131, %v151
    %v180 = vsub.f32 %v132, %v153
    %v181 = vsub.f32 %v133, %v155
    %v182 = vsub.f32 %v134, %v157
    %v183 = vsub.f32 %v135, %v159
    %v184 = vsub.f32 %v136, %v161
    %v185 = vsub.f32 %v137, %v163
    %v186 = vsub.f32 %v138, %v165
    %v187 = vsub.f32 %v139, %v167
    %v188 = vsub.f32 %v140, %v169
    %v189 = vsub.f32 %v141, %v171
    %v190 = vsub.f32 %v142, %v173
    %v191 = vsub.f32 %v143, %v175
    %v192 = vmul.f32 %v176, 1.442695
    %v193 = vpow.pop %v192
    %v194 = vmul.f32 %v177, 1.442695
    %v195 = vpow.pop %v194
    %v196 = vmul.f32 %v178, 1.442695
    %v197 = vpow.pop %v196
    %v198 = vmul.f32 %v179, 1.442695
    %v199 = vpow.pop %v198
    %v200 = vmul.f32 %v180, 1.442695
    %v201 = vpow.pop %v200
    %v202 = vmul.f32 %v181, 1.442695
    %v203 = vpow.pop %v202
    %v204 = vmul.f32 %v182, 1.442695
    %v205 = vpow.pop %v204
    %v206 = vmul.f32 %v183, 1.442695
    %v207 = vpow.pop %v206
    %v208 = vmul.f32 %v184, 1.442695
    %v209 = vpow.pop %v208
    %v210 = vmul.f32 %v185, 1.442695
    %v211 = vpow.pop %v210
    %v212 = vmul.f32 %v186, 1.442695
    %v213 = vpow.pop %v212
    %v214 = vmul.f32 %v187, 1.442695
    %v215 = vpow.pop %v214
    %v216 = vmul.f32 %v188, 1.442695
    %v217 = vpow.pop %v216
    %v218 = vmul.f32 %v189, 1.442695
    %v219 = vpow.pop %v218
    %v220 = vmul.f32 %v190, 1.442695
    %v221 = vpow.pop %v220
    %v222 = vmul.f32 %v191, 1.442695
    %v223 = vpow.pop %v222
    %v224 = vmul.f32 %v193, %v80
    %v225 = vmul.f32 %v195, %v81
    %v226 = vmul.f32 %v197, %v82
    %v227 = vmul.f32 %v199, %v83
    %v228 = vmul.f32 %v201, %v84
    %v229 = vmul.f32 %v203, %v85
    %v230 = vmul.f32 %v205, %v86
    %v231 = vmul.f32 %v207, %v87
    %v232 = vmul.f32 %v209, %v88
    %v233 = vmul.f32 %v211, %v89
    %v234 = vmul.f32 %v213, %v90
    %v235 = vmul.f32 %v215, %v91
    %v236 = vmul.f32 %v217, %v92
    %v237 = vmul.f32 %v219, %v93
    %v238 = vmul.f32 %v221, %v94
    %v239 = vmul.f32 %v223, %v95
    %240 = vadd.xlane.f32.xlu0 %v224
    %v241 = vpop.xlane.xlu0 %240
    %242 = vadd.xlane.f32.xlu0 %v225
    %v243 = vpop.xlane.xlu0 %242
    %244 = vadd.xlane.f32.xlu0 %v226
    %v245 = vpop.xlane.xlu0 %244
    %246 = vadd.xlane.f32.xlu0 %v227
    %v247 = vpop.xlane.xlu0 %246
    %248 = vadd.xlane.f32.xlu0 %v228
    %v249 = vpop.xlane.xlu0 %248
    %250 = vadd.xlane.f32.xlu0 %v229
    %v251 = vpop.xlane.xlu0 %250
    %252 = vadd.xlane.f32.xlu0 %v230
    %v253 = vpop.xlane.xlu0 %252
    %254 = vadd.xlane.f32.xlu0 %v231
    %v255 = vpop.xlane.xlu0 %254
    %256 = vadd.xlane.f32.xlu0 %v232
    %v257 = vpop.xlane.xlu0 %256
    %258 = vadd.xlane.f32.xlu0 %v233
    %v259 = vpop.xlane.xlu0 %258
    %260 = vadd.xlane.f32.xlu0 %v234
    %v261 = vpop.xlane.xlu0 %260
    %262 = vadd.xlane.f32.xlu0 %v235
    %v263 = vpop.xlane.xlu0 %262
    %264 = vadd.xlane.f32.xlu0 %v236
    %v265 = vpop.xlane.xlu0 %264
    %266 = vadd.xlane.f32.xlu0 %v237
    %v267 = vpop.xlane.xlu0 %266
    %268 = vadd.xlane.f32.xlu0 %v238
    %v269 = vpop.xlane.xlu0 %268
    %270 = vadd.xlane.f32.xlu0 %v239
    %v271 = vpop.xlane.xlu0 %270
    %vm272 = vcmp.gt.f32.partialorder %v241, 0.0
    %vm273 = vcmp.gt.f32.partialorder %v243, 0.0
    %vm274 = vcmp.gt.f32.partialorder %v245, 0.0
    %vm275 = vcmp.gt.f32.partialorder %v247, 0.0
    %vm276 = vcmp.gt.f32.partialorder %v249, 0.0
    %vm277 = vcmp.gt.f32.partialorder %v251, 0.0
    %vm278 = vcmp.gt.f32.partialorder %v253, 0.0
    %vm279 = vcmp.gt.f32.partialorder %v255, 0.0
    %vm280 = vcmp.gt.f32.partialorder %v257, 0.0
    %vm281 = vcmp.gt.f32.partialorder %v259, 0.0
    %vm282 = vcmp.gt.f32.partialorder %v261, 0.0
    %vm283 = vcmp.gt.f32.partialorder %v263, 0.0
    %vm284 = vcmp.gt.f32.partialorder %v265, 0.0
    %vm285 = vcmp.gt.f32.partialorder %v267, 0.0
    %vm286 = vcmp.gt.f32.partialorder %v269, 0.0
    %vm287 = vcmp.gt.f32.partialorder %v271, 0.0
    %v288 = vsel %vm272, %v241, 1.0
    %v289 = vsel %vm273, %v243, 1.0
    %v290 = vsel %vm274, %v245, 1.0
    %v291 = vsel %vm275, %v247, 1.0
    %v292 = vsel %vm276, %v249, 1.0
    %v293 = vsel %vm277, %v251, 1.0
    %v294 = vsel %vm278, %v253, 1.0
    %v295 = vsel %vm279, %v255, 1.0
    %v296 = vsel %vm280, %v257, 1.0
    %v297 = vsel %vm281, %v259, 1.0
    %v298 = vsel %vm282, %v261, 1.0
    %v299 = vsel %vm283, %v263, 1.0
    %v300 = vsel %vm284, %v265, 1.0
    %v301 = vsel %vm285, %v267, 1.0
    %v302 = vsel %vm286, %v269, 1.0
    %v303 = vsel %vm287, %v271, 1.0
    %v304 = vrcp.pop %v288
    %v305 = vrcp.pop %v289
    %v306 = vrcp.pop %v290
    %v307 = vrcp.pop %v291
    %v308 = vrcp.pop %v292
    %v309 = vrcp.pop %v293
    %v310 = vrcp.pop %v294
    %v311 = vrcp.pop %v295
    %v312 = vrcp.pop %v296
    %v313 = vrcp.pop %v297
    %v314 = vrcp.pop %v298
    %v315 = vrcp.pop %v299
    %v316 = vrcp.pop %v300
    %v317 = vrcp.pop %v301
    %v318 = vrcp.pop %v302
    %v319 = vrcp.pop %v303
    %v320 = vmul.f32 %v224, %v304
    %v321 = vmul.f32 %v225, %v305
    %v322 = vmul.f32 %v226, %v306
    %v323 = vmul.f32 %v227, %v307
    %v324 = vmul.f32 %v228, %v308
    %v325 = vmul.f32 %v229, %v309
    %v326 = vmul.f32 %v230, %v310
    %v327 = vmul.f32 %v231, %v311
    %v328 = vmul.f32 %v232, %v312
    %v329 = vmul.f32 %v233, %v313
    %v330 = vmul.f32 %v234, %v314
    %v331 = vmul.f32 %v235, %v315
    %v332 = vmul.f32 %v236, %v316
    %v333 = vmul.f32 %v237, %v317
    %v334 = vmul.f32 %v238, %v318
    %v335 = vmul.f32 %v239, %v319
    %v336 = vpack.c.bf16 %v321, %v320
    %v337 = vpack.c.bf16 %v323, %v322
    %v338 = vpack.c.bf16 %v325, %v324
    %v339 = vpack.c.bf16 %v327, %v326
    %v340 = vpack.c.bf16 %v329, %v328
    %v341 = vpack.c.bf16 %v331, %v330
    %v342 = vpack.c.bf16 %v333, %v332
    %v343 = vpack.c.bf16 %v335, %v334
    %v344 = vld [vmem:[#allocation7] sm:$0xff]
    %v345 = vld [vmem:[#allocation7 + $0x8] sm:$0xff]
    %v346 = vld [vmem:[#allocation7 + $0x10] sm:$0xff]
    %v347 = vld [vmem:[#allocation7 + $0x18] sm:$0xff]
    %v348 = vld [vmem:[#allocation7 + $0x20] sm:$0xff]
    %v349 = vld [vmem:[#allocation7 + $0x28] sm:$0xff]
    %v350 = vld [vmem:[#allocation7 + $0x30] sm:$0xff]
    %v351 = vld [vmem:[#allocation7 + $0x38] sm:$0xff]
    %v352 = vld [vmem:[#allocation7 + $0x40] sm:$0xff]
    %v353 = vld [vmem:[#allocation7 + $0x48] sm:$0xff]
    %v354 = vld [vmem:[#allocation7 + $0x50] sm:$0xff]
    %v355 = vld [vmem:[#allocation7 + $0x58] sm:$0xff]
    %v356 = vld [vmem:[#allocation7 + $0x60] sm:$0xff]
    %v357 = vld [vmem:[#allocation7 + $0x68] sm:$0xff]
    %v358 = vld [vmem:[#allocation7 + $0x70] sm:$0xff]
    %v359 = vld [vmem:[#allocation7 + $0x78] sm:$0xff]
    %v360 = vld [vmem:[#allocation8] sm:$0xff]
    %v361 = vld [vmem:[#allocation8 + $0x8] sm:$0xff]
    %v362 = vld [vmem:[#allocation8 + $0x10] sm:$0xff]
    %v363 = vld [vmem:[#allocation8 + $0x18] sm:$0xff]
    %v364 = vld [vmem:[#allocation8 + $0x20] sm:$0xff]
    %v365 = vld [vmem:[#allocation8 + $0x28] sm:$0xff]
    %v366 = vld [vmem:[#allocation8 + $0x30] sm:$0xff]
    %v367 = vld [vmem:[#allocation8 + $0x38] sm:$0xff]
    %v368 = vld [vmem:[#allocation8 + $0x40] sm:$0xff]
    %v369 = vld [vmem:[#allocation8 + $0x48] sm:$0xff]
    %v370 = vld [vmem:[#allocation8 + $0x50] sm:$0xff]
    %v371 = vld [vmem:[#allocation8 + $0x58] sm:$0xff]
    %v372 = vld [vmem:[#allocation8 + $0x60] sm:$0xff]
    %v373 = vld [vmem:[#allocation8 + $0x68] sm:$0xff]
    %v374 = vld [vmem:[#allocation8 + $0x70] sm:$0xff]
    %v375 = vld [vmem:[#allocation8 + $0x78] sm:$0xff]
    %v376 = vpack.c.bf16 %v361, %v360
    %v377 = vpack.c.bf16 %v363, %v362
    %v378 = vpack.c.bf16 %v365, %v364
    %v379 = vpack.c.bf16 %v367, %v366
    %v380 = vpack.c.bf16 %v369, %v368
    %v381 = vpack.c.bf16 %v371, %v370
    %v382 = vpack.c.bf16 %v373, %v372
    %v383 = vpack.c.bf16 %v375, %v374
    %v384 = vld [vmem:[%s4] sm:$0x1]
    %v385 = vpack.c.bf16 %v345, %v344
    %v386 = vpack.c.bf16 %v347, %v346
    %v387 = vpack.c.bf16 %v349, %v348
    %v388 = vpack.c.bf16 %v351, %v350
    %v389 = vpack.c.bf16 %v353, %v352
    %v390 = vpack.c.bf16 %v355, %v354
    %v391 = vpack.c.bf16 %v357, %v356
    %v392 = vpack.c.bf16 %v359, %v358
    %393 = vmatprep.subr.bf16.mxu0 0
    %394 = vmatpush1.bf16.msra.mxu0 %v385
    %395 = vmatprep.subr.bf16.mxu0 0
    %396 = vmatpush1.bf16.msra.mxu0 %v386
    %397 = vmatprep.subr.bf16.mxu0 0
    %398 = vmatpush1.bf16.msra.mxu0 %v387
    %399 = vmatprep.subr.bf16.mxu0 0
    %400 = vmatpush1.bf16.msra.mxu0 %v388
    %401 = vmatprep.subr.bf16.mxu0 0
    %402 = vmatpush1.bf16.msra.mxu0 %v389
    %403 = vmatprep.subr.bf16.mxu0 0
    %404 = vmatpush1.bf16.msra.mxu0 %v390
    %405 = vmatprep.subr.bf16.mxu0 0
    %406 = vmatpush1.bf16.msra.mxu0 %v391
    %407 = vmatprep.subr.bf16.mxu0 0
    %408 = vmatpush1.bf16.msra.mxu0 %v392
    %409 = vmatprep.subr.bf16.mxu0 0
    %410 = vmatpush1.bf16.msra.mxu0 0
    %411 = vmatprep.subr.bf16.mxu0 0
    %412 = vmatpush1.bf16.msra.mxu0 0
    %413 = vmatprep.subr.bf16.mxu0 0
    %414 = vmatpush1.bf16.msra.mxu0 0
    %415 = vmatprep.subr.bf16.mxu0 0
    %416 = vmatpush1.bf16.msra.mxu0 0
    %417 = vmatprep.subr.bf16.mxu0 0
    %418 = vmatpush1.bf16.msra.mxu0 0
    %419 = vmatprep.subr.bf16.mxu0 0
    %420 = vmatpush1.bf16.msra.mxu0 0
    %421 = vmatprep.subr.bf16.mxu0 0
    %422 = vmatpush1.bf16.msra.mxu0 0
    %423 = vmatprep.subr.bf16.mxu0 0
    %424 = vmatpush1.bf16.msra.mxu0 0
    %425 = vmatprep.mubr.bf16.mxu0 0
    %426 = vmatmul.mubr.bf16.gmra.mrb[0].mxu0 %v336
    %v427 = vpop.f32.mrb[0].mxu0
    %v428 = vadd.f32 0.0, %v427
    %v429 = vpop.f32.mrb[0].mxu0
    %v430 = vpop.f32.mrb[0].mxu0
    %v431 = vadd.f32 0.0, %v430
    %v432 = vpop.f32.mrb[0].mxu0
    %433 = vmatprep.mubr.bf16.mxu0 0
    %434 = vmatmul.mubr.bf16.gmra.mrb[0].mxu0 %v337
    %v435 = vpop.f32.mrb[0].mxu0
    %v436 = vadd.f32 0.0, %v435
    %v437 = vpop.f32.mrb[0].mxu0
    %v438 = vpop.f32.mrb[0].mxu0
    %v439 = vadd.f32 0.0, %v438
    %v440 = vpop.f32.mrb[0].mxu0
    %441 = vmatprep.mubr.bf16.mxu0 0
    %442 = vmatmul.mubr.bf16.gmra.mrb[0].mxu0 %v338
    %v443 = vpop.f32.mrb[0].mxu0
    %v444 = vadd.f32 0.0, %v443
    %v445 = vpop.f32.mrb[0].mxu0
    %v446 = vpop.f32.mrb[0].mxu0
    %v447 = vadd.f32 0.0, %v446
    %v448 = vpop.f32.mrb[0].mxu0
    %449 = vmatprep.mubr.bf16.mxu0 0
    %450 = vmatmul.mubr.bf16.gmra.mrb[0].mxu0 %v339
    %v451 = vpop.f32.mrb[0].mxu0
    %v452 = vadd.f32 0.0, %v451
    %v453 = vpop.f32.mrb[0].mxu0
    %v454 = vpop.f32.mrb[0].mxu0
    %v455 = vadd.f32 0.0, %v454
    %v456 = vpop.f32.mrb[0].mxu0
    %457 = vmatprep.mubr.bf16.mxu0 0
    %458 = vmatmul.mubr.bf16.gmra.mrb[0].mxu0 %v340
    %v459 = vpop.f32.mrb[0].mxu0
    %v460 = vadd.f32 0.0, %v459
    %v461 = vpop.f32.mrb[0].mxu0
    %v462 = vpop.f32.mrb[0].mxu0
    %v463 = vadd.f32 0.0, %v462
    %v464 = vpop.f32.mrb[0].mxu0
    %465 = vmatprep.mubr.bf16.mxu0 0
    %466 = vmatmul.mubr.bf16.gmra.mrb[0].mxu0 %v341
    %v467 = vpop.f32.mrb[0].mxu0
    %v468 = vadd.f32 0.0, %v467
    %v469 = vpop.f32.mrb[0].mxu0
    %v470 = vpop.f32.mrb[0].mxu0
    %v471 = vadd.f32 0.0, %v470
    %v472 = vpop.f32.mrb[0].mxu0
    %473 = vmatprep.mubr.bf16.mxu0 0
    %474 = vmatmul.mubr.bf16.gmra.mrb[0].mxu0 %v342
    %v475 = vpop.f32.mrb[0].mxu0
    %v476 = vadd.f32 0.0, %v475
    %v477 = vpop.f32.mrb[0].mxu0
    %v478 = vpop.f32.mrb[0].mxu0
    %v479 = vadd.f32 0.0, %v478
    %v480 = vpop.f32.mrb[0].mxu0
    %481 = vmatprep.mubr.bf16.mxu0 0
    %482 = vmatmul.mubr.bf16.gmra.mrb[0].mxu0 %v343
    %v483 = vpop.f32.mrb[0].mxu0
    %v484 = vadd.f32 0.0, %v483
    %v485 = vpop.f32.mrb[0].mxu0
    %v486 = vpop.f32.mrb[0].mxu0
    %v487 = vadd.f32 0.0, %v486
    %v488 = vpop.f32.mrb[0].mxu0
    %489 = vdwg.mxu0
    %v490 = vpack.c.bf16 %v431, %v428
    %v491 = vpack.c.bf16 %v439, %v436
    %v492 = vpack.c.bf16 %v447, %v444
    %v493 = vpack.c.bf16 %v455, %v452
    %v494 = vpack.c.bf16 %v463, %v460
    %v495 = vpack.c.bf16 %v471, %v468
    %v496 = vpack.c.bf16 %v479, %v476
    %v497 = vpack.c.bf16 %v487, %v484
    %v499 = vlaneseq
    %v500 = vshrl.u32 %v499, 7
    %v501 = vsub.s32 0, %v500
    %v502 = vrot.slane %v384, %v501
    %504 = vmatprep.subr.bf16.mxu0 0
    %505 = vmatpush1.bf16.msra.mxu0 %v376
    %506 = vmatprep.subr.bf16.mxu0 0
    %507 = vmatpush1.bf16.msra.mxu0 %v377
    %508 = vmatprep.subr.bf16.mxu0 0
    %509 = vmatpush1.bf16.msra.mxu0 %v378
    %510 = vmatprep.subr.bf16.mxu0 0
    %511 = vmatpush1.bf16.msra.mxu0 %v379
    %512 = vmatprep.subr.bf16.mxu0 0
    %513 = vmatpush1.bf16.msra.mxu0 %v380
    %514 = vmatprep.subr.bf16.mxu0 0
    %515 = vmatpush1.bf16.msra.mxu0 %v381
    %516 = vmatprep.subr.bf16.mxu0 0
    %517 = vmatpush1.bf16.msra.mxu0 %v382
    %518 = vmatprep.subr.bf16.mxu0 0
    %519 = vmatpush1.bf16.msra.mxu0 %v383
    %520 = vmatprep.subr.bf16.mxu0 0
    %521 = vmatpush1.bf16.msra.mxu0 0
    %522 = vmatprep.subr.bf16.mxu0 0
    %523 = vmatpush1.bf16.msra.mxu0 0
    %524 = vmatprep.subr.bf16.mxu0 0
    %525 = vmatpush1.bf16.msra.mxu0 0
    %526 = vmatprep.subr.bf16.mxu0 0
    %527 = vmatpush1.bf16.msra.mxu0 0
    %528 = vmatprep.subr.bf16.mxu0 0
    %529 = vmatpush1.bf16.msra.mxu0 0
    %530 = vmatprep.subr.bf16.mxu0 0
    %531 = vmatpush1.bf16.msra.mxu0 0
    %532 = vmatprep.subr.bf16.mxu0 0
    %533 = vmatpush1.bf16.msra.mxu0 0
    %534 = vmatprep.subr.bf16.mxu0 0
    %535 = vmatpush1.bf16.msra.mxu0 0
    %536 = vmatprep.mubr.bf16.mxu0 0
    %537 = vmatmul.mubr.bf16.gmra.mrb[0].mxu0 %v490
    %v538 = vpop.f32.mrb[0].mxu0
    %v539 = vadd.f32 %v502, %v538
    %v540 = vpop.f32.mrb[0].mxu0
    %v541 = vpop.f32.mrb[0].mxu0
    %v542 = vadd.f32 %v502, %v541
    %v543 = vpop.f32.mrb[0].mxu0
    %544 = vmatprep.mubr.bf16.mxu0 0
    %545 = vmatmul.mubr.bf16.gmra.mrb[0].mxu0 %v491
    %v546 = vpop.f32.mrb[0].mxu0
    %v547 = vadd.f32 %v502, %v546
    %v548 = vpop.f32.mrb[0].mxu0
    %v549 = vpop.f32.mrb[0].mxu0
    %v550 = vadd.f32 %v502, %v549
    %v551 = vpop.f32.mrb[0].mxu0
    %552 = vmatprep.mubr.bf16.mxu0 0
    %553 = vmatmul.mubr.bf16.gmra.mrb[0].mxu0 %v492
    %v554 = vpop.f32.mrb[0].mxu0
    %v555 = vadd.f32 %v502, %v554
    %v556 = vpop.f32.mrb[0].mxu0
    %v557 = vpop.f32.mrb[0].mxu0
    %v558 = vadd.f32 %v502, %v557
    %v559 = vpop.f32.mrb[0].mxu0
    %560 = vmatprep.mubr.bf16.mxu0 0
    %561 = vmatmul.mubr.bf16.gmra.mrb[0].mxu0 %v493
    %v562 = vpop.f32.mrb[0].mxu0
    %v563 = vadd.f32 %v502, %v562
    %v564 = vpop.f32.mrb[0].mxu0
    %v565 = vpop.f32.mrb[0].mxu0
    %v566 = vadd.f32 %v502, %v565
    %v567 = vpop.f32.mrb[0].mxu0
    %568 = vmatprep.mubr.bf16.mxu0 0
    %569 = vmatmul.mubr.bf16.gmra.mrb[0].mxu0 %v494
    %v570 = vpop.f32.mrb[0].mxu0
    %v571 = vadd.f32 %v502, %v570
    %v572 = vpop.f32.mrb[0].mxu0
    %v573 = vpop.f32.mrb[0].mxu0
    %v574 = vadd.f32 %v502, %v573
    %v575 = vpop.f32.mrb[0].mxu0
    %576 = vmatprep.mubr.bf16.mxu0 0
    %577 = vmatmul.mubr.bf16.gmra.mrb[0].mxu0 %v495
    %v578 = vpop.f32.mrb[0].mxu0
    %v579 = vadd.f32 %v502, %v578
    %v580 = vpop.f32.mrb[0].mxu0
    %v581 = vpop.f32.mrb[0].mxu0
    %v582 = vadd.f32 %v502, %v581
    %v583 = vpop.f32.mrb[0].mxu0
    %584 = vmatprep.mubr.bf16.mxu0 0
    %585 = vmatmul.mubr.bf16.gmra.mrb[0].mxu0 %v496
    %v586 = vpop.f32.mrb[0].mxu0
    %v587 = vadd.f32 %v502, %v586
    %v588 = vpop.f32.mrb[0].mxu0
    %v589 = vpop.f32.mrb[0].mxu0
    %v590 = vadd.f32 %v502, %v589
    %v591 = vpop.f32.mrb[0].mxu0
    %592 = vmatprep.mubr.bf16.mxu0 0
    %593 = vmatmul.mubr.bf16.gmra.mrb[0].mxu0 %v497
    %v594 = vpop.f32.mrb[0].mxu0
    %v595 = vadd.f32 %v502, %v594
    %v596 = vpop.f32.mrb[0].mxu0
    %v597 = vpop.f32.mrb[0].mxu0
    %v598 = vadd.f32 %v502, %v597
    %v599 = vpop.f32.mrb[0].mxu0
    %600 = vdwg.mxu0
    %v601 = vmax.f32 %v539, 0.0
    %v602 = vmax.f32 %v542, 0.0
    %v603 = vmax.f32 %v547, 0.0
    %v604 = vmax.f32 %v550, 0.0
    %v605 = vmax.f32 %v555, 0.0
    %v606 = vmax.f32 %v558, 0.0
    %v607 = vmax.f32 %v563, 0.0
    %v608 = vmax.f32 %v566, 0.0
    %v609 = vmax.f32 %v571, 0.0
    %v610 = vmax.f32 %v574, 0.0
    %v611 = vmax.f32 %v579, 0.0
    %v612 = vmax.f32 %v582, 0.0
    %v613 = vmax.f32 %v587, 0.0
    %v614 = vmax.f32 %v590, 0.0
    %v615 = vmax.f32 %v595, 0.0
    %v616 = vmax.f32 %v598, 0.0
    %s617 = scalar_lea.vmem [#allocation8], 128
    %v618 = vld [vmem:[%s617] sm:$0xff]
    %v619 = vld [vmem:[%s617 + $0x8] sm:$0xff]
    %v620 = vld [vmem:[%s617 + $0x10] sm:$0xff]
    %v621 = vld [vmem:[%s617 + $0x18] sm:$0xff]
    %v622 = vld [vmem:[%s617 + $0x20] sm:$0xff]
    %v623 = vld [vmem:[%s617 + $0x28] sm:$0xff]
    %v624 = vld [vmem:[%s617 + $0x30] sm:$0xff]
    %v625 = vld [vmem:[%s617 + $0x38] sm:$0xff]
    %v626 = vld [vmem:[%s617 + $0x40] sm:$0xff]
    %v627 = vld [vmem:[%s617 + $0x48] sm:$0xff]
    %v628 = vld [vmem:[%s617 + $0x50] sm:$0xff]
    %v629 = vld [vmem:[%s617 + $0x58] sm:$0xff]
    %v630 = vld [vmem:[%s617 + $0x60] sm:$0xff]
    %v631 = vld [vmem:[%s617 + $0x68] sm:$0xff]
    %v632 = vld [vmem:[%s617 + $0x70] sm:$0xff]
    %v633 = vld [vmem:[%s617 + $0x78] sm:$0xff]
    %v634 = vpack.c.bf16 %v619, %v618
    %v635 = vpack.c.bf16 %v621, %v620
    %v636 = vpack.c.bf16 %v623, %v622
    %v637 = vpack.c.bf16 %v625, %v624
    %v638 = vpack.c.bf16 %v627, %v626
    %v639 = vpack.c.bf16 %v629, %v628
    %v640 = vpack.c.bf16 %v631, %v630
    %v641 = vpack.c.bf16 %v633, %v632
    %s642 = scalar_lea.vmem %s4, 1
    %v643 = vld [vmem:[%s642] sm:$0x1]
    %v644 = vpack.c.bf16 %v602, %v601
    %v645 = vpack.c.bf16 %v604, %v603
    %v646 = vpack.c.bf16 %v606, %v605
    %v647 = vpack.c.bf16 %v608, %v607
    %v648 = vpack.c.bf16 %v610, %v609
    %v649 = vpack.c.bf16 %v612, %v611
    %v650 = vpack.c.bf16 %v614, %v613
    %v651 = vpack.c.bf16 %v616, %v615
    %652 = vmatprep.subr.bf16.mxu0 0
    %653 = vmatpush1.bf16.msra.mxu0 %v644
    %654 = vmatprep.subr.bf16.mxu0 0
    %655 = vmatpush1.bf16.msra.mxu0 %v645
    %656 = vmatprep.subr.bf16.mxu0 0
    %657 = vmatpush1.bf16.msra.mxu0 %v646
    %658 = vmatprep.subr.bf16.mxu0 0
    %659 = vmatpush1.bf16.msra.mxu0 %v647
    %660 = vmatprep.subr.bf16.mxu0 0
    %661 = vmatpush1.bf16.msra.mxu0 %v648
    %662 = vmatprep.subr.bf16.mxu0 0
    %663 = vmatpush1.bf16.msra.mxu0 %v649
    %664 = vmatprep.subr.bf16.mxu0 0
    %665 = vmatpush1.bf16.msra.mxu0 %v650
    %666 = vmatprep.subr.bf16.mxu0 0
    %667 = vmatpush1.bf16.msra.mxu0 %v651
    %668 = vmatprep.subr.bf16.mxu0 0
    %669 = vmatpush1.bf16.msra.mxu0 0
    %670 = vmatprep.subr.bf16.mxu0 0
    %671 = vmatpush1.bf16.msra.mxu0 0
    %672 = vmatprep.subr.bf16.mxu0 0
    %673 = vmatpush1.bf16.msra.mxu0 0
    %674 = vmatprep.subr.bf16.mxu0 0
    %675 = vmatpush1.bf16.msra.mxu0 0
    %676 = vmatprep.subr.bf16.mxu0 0
    %677 = vmatpush1.bf16.msra.mxu0 0
    %678 = vmatprep.subr.bf16.mxu0 0
    %679 = vmatpush1.bf16.msra.mxu0 0
    %680 = vmatprep.subr.bf16.mxu0 0
    %681 = vmatpush1.bf16.msra.mxu0 0
    %682 = vmatprep.subr.bf16.mxu0 0
    %683 = vmatpush1.bf16.msra.mxu0 0
    %684 = vmatprep.mubr.bf16.mxu0 0
    %685 = vmatmul.mubr.bf16.gmra.mrb[0].mxu0 %v336
    %v686 = vpop.f32.mrb[0].mxu0
    %v687 = vadd.f32 0.0, %v686
    %v688 = vpop.f32.mrb[0].mxu0
    %v689 = vpop.f32.mrb[0].mxu0
    %v690 = vadd.f32 0.0, %v689
    %v691 = vpop.f32.mrb[0].mxu0
    %692 = vmatprep.mubr.bf16.mxu0 0
    %693 = vmatmul.mubr.bf16.gmra.mrb[0].mxu0 %v337
    %v694 = vpop.f32.mrb[0].mxu0
    %v695 = vadd.f32 0.0, %v694
    %v696 = vpop.f32.mrb[0].mxu0
    %v697 = vpop.f32.mrb[0].mxu0
    %v698 = vadd.f32 0.0, %v697
    %v699 = vpop.f32.mrb[0].mxu0
    %700 = vmatprep.mubr.bf16.mxu0 0
    %701 = vmatmul.mubr.bf16.gmra.mrb[0].mxu0 %v338
    %v702 = vpop.f32.mrb[0].mxu0
    %v703 = vadd.f32 0.0, %v702
    %v704 = vpop.f32.mrb[0].mxu0
    %v705 = vpop.f32.mrb[0].mxu0
    %v706 = vadd.f32 0.0, %v705
    %v707 = vpop.f32.mrb[0].mxu0
    %708 = vmatprep.mubr.bf16.mxu0 0
    %709 = vmatmul.mubr.bf16.gmra.mrb[0].mxu0 %v339
    %v710 = vpop.f32.mrb[0].mxu0
    %v711 = vadd.f32 0.0, %v710
    %v712 = vpop.f32.mrb[0].mxu0
    %v713 = vpop.f32.mrb[0].mxu0
    %v714 = vadd.f32 0.0, %v713
    %v715 = vpop.f32.mrb[0].mxu0
    %716 = vmatprep.mubr.bf16.mxu0 0
    %717 = vmatmul.mubr.bf16.gmra.mrb[0].mxu0 %v340
    %v718 = vpop.f32.mrb[0].mxu0
    %v719 = vadd.f32 0.0, %v718
    %v720 = vpop.f32.mrb[0].mxu0
    %v721 = vpop.f32.mrb[0].mxu0
    %v722 = vadd.f32 0.0, %v721
    %v723 = vpop.f32.mrb[0].mxu0
    %724 = vmatprep.mubr.bf16.mxu0 0
    %725 = vmatmul.mubr.bf16.gmra.mrb[0].mxu0 %v341
    %v726 = vpop.f32.mrb[0].mxu0
    %v727 = vadd.f32 0.0, %v726
    %v728 = vpop.f32.mrb[0].mxu0
    %v729 = vpop.f32.mrb[0].mxu0
    %v730 = vadd.f32 0.0, %v729
    %v731 = vpop.f32.mrb[0].mxu0
    %732 = vmatprep.mubr.bf16.mxu0 0
    %733 = vmatmul.mubr.bf16.gmra.mrb[0].mxu0 %v342
    %v734 = vpop.f32.mrb[0].mxu0
    %v735 = vadd.f32 0.0, %v734
    %v736 = vpop.f32.mrb[0].mxu0
    %v737 = vpop.f32.mrb[0].mxu0
    %v738 = vadd.f32 0.0, %v737
    %v739 = vpop.f32.mrb[0].mxu0
    %740 = vmatprep.mubr.bf16.mxu0 0
    %741 = vmatmul.mubr.bf16.gmra.mrb[0].mxu0 %v343
    %v742 = vpop.f32.mrb[0].mxu0
    %v743 = vadd.f32 0.0, %v742
    %v744 = vpop.f32.mrb[0].mxu0
    %v745 = vpop.f32.mrb[0].mxu0
    %v746 = vadd.f32 0.0, %v745
    %v747 = vpop.f32.mrb[0].mxu0
    %748 = vdwg.mxu0
    %v749 = vpack.c.bf16 %v690, %v687
    %v750 = vpack.c.bf16 %v698, %v695
    %v751 = vpack.c.bf16 %v706, %v703
    %v752 = vpack.c.bf16 %v714, %v711
    %v753 = vpack.c.bf16 %v722, %v719
    %v754 = vpack.c.bf16 %v730, %v727
    %v755 = vpack.c.bf16 %v738, %v735
    %v756 = vpack.c.bf16 %v746, %v743
    %v758 = vlaneseq
    %v759 = vshrl.u32 %v758, 7
    %v760 = vsub.s32 0, %v759
    %v761 = vrot.slane %v643, %v760
    %763 = vmatprep.subr.bf16.mxu0 0
    %764 = vmatpush1.bf16.msra.mxu0 %v634
    %765 = vmatprep.subr.bf16.mxu0 0
    %766 = vmatpush1.bf16.msra.mxu0 %v635
    %767 = vmatprep.subr.bf16.mxu0 0
    %768 = vmatpush1.bf16.msra.mxu0 %v636
    %769 = vmatprep.subr.bf16.mxu0 0
    %770 = vmatpush1.bf16.msra.mxu0 %v637
    %771 = vmatprep.subr.bf16.mxu0 0
    %772 = vmatpush1.bf16.msra.mxu0 %v638
    %773 = vmatprep.subr.bf16.mxu0 0
    %774 = vmatpush1.bf16.msra.mxu0 %v639
    %775 = vmatprep.subr.bf16.mxu0 0
    %776 = vmatpush1.bf16.msra.mxu0 %v640
    %777 = vmatprep.subr.bf16.mxu0 0
    %778 = vmatpush1.bf16.msra.mxu0 %v641
    %779 = vmatprep.subr.bf16.mxu0 0
    %780 = vmatpush1.bf16.msra.mxu0 0
    %781 = vmatprep.subr.bf16.mxu0 0
    %782 = vmatpush1.bf16.msra.mxu0 0
    %783 = vmatprep.subr.bf16.mxu0 0
    %784 = vmatpush1.bf16.msra.mxu0 0
    %785 = vmatprep.subr.bf16.mxu0 0
    %786 = vmatpush1.bf16.msra.mxu0 0
    %787 = vmatprep.subr.bf16.mxu0 0
    %788 = vmatpush1.bf16.msra.mxu0 0
    %789 = vmatprep.subr.bf16.mxu0 0
    %790 = vmatpush1.bf16.msra.mxu0 0
    %791 = vmatprep.subr.bf16.mxu0 0
    %792 = vmatpush1.bf16.msra.mxu0 0
    %793 = vmatprep.subr.bf16.mxu0 0
    %794 = vmatpush1.bf16.msra.mxu0 0
    %795 = vmatprep.mubr.bf16.mxu0 0
    %796 = vmatmul.mubr.bf16.gmra.mrb[0].mxu0 %v749
    %v797 = vpop.f32.mrb[0].mxu0
    %v798 = vadd.f32 %v761, %v797
    %v799 = vpop.f32.mrb[0].mxu0
    %v800 = vpop.f32.mrb[0].mxu0
    %v801 = vadd.f32 %v761, %v800
    %v802 = vpop.f32.mrb[0].mxu0
    %803 = vmatprep.mubr.bf16.mxu0 0
    %804 = vmatmul.mubr.bf16.gmra.mrb[0].mxu0 %v750
    %v805 = vpop.f32.mrb[0].mxu0
    %v806 = vadd.f32 %v761, %v805
    %v807 = vpop.f32.mrb[0].mxu0
    %v808 = vpop.f32.mrb[0].mxu0
    %v809 = vadd.f32 %v761, %v808
    %v810 = vpop.f32.mrb[0].mxu0
    %811 = vmatprep.mubr.bf16.mxu0 0
    %812 = vmatmul.mubr.bf16.gmra.mrb[0].mxu0 %v751
    %v813 = vpop.f32.mrb[0].mxu0
    %v814 = vadd.f32 %v761, %v813
    %v815 = vpop.f32.mrb[0].mxu0
    %v816 = vpop.f32.mrb[0].mxu0
    %v817 = vadd.f32 %v761, %v816
    %v818 = vpop.f32.mrb[0].mxu0
    %819 = vmatprep.mubr.bf16.mxu0 0
    %820 = vmatmul.mubr.bf16.gmra.mrb[0].mxu0 %v752
    %v821 = vpop.f32.mrb[0].mxu0
    %v822 = vadd.f32 %v761, %v821
    %v823 = vpop.f32.mrb[0].mxu0
    %v824 = vpop.f32.mrb[0].mxu0
    %v825 = vadd.f32 %v761, %v824
    %v826 = vpop.f32.mrb[0].mxu0
    %827 = vmatprep.mubr.bf16.mxu0 0
    %828 = vmatmul.mubr.bf16.gmra.mrb[0].mxu0 %v753
    %v829 = vpop.f32.mrb[0].mxu0
    %v830 = vadd.f32 %v761, %v829
    %v831 = vpop.f32.mrb[0].mxu0
    %v832 = vpop.f32.mrb[0].mxu0
    %v833 = vadd.f32 %v761, %v832
    %v834 = vpop.f32.mrb[0].mxu0
    %835 = vmatprep.mubr.bf16.mxu0 0
    %836 = vmatmul.mubr.bf16.gmra.mrb[0].mxu0 %v754
    %v837 = vpop.f32.mrb[0].mxu0
    %v838 = vadd.f32 %v761, %v837
    %v839 = vpop.f32.mrb[0].mxu0
    %v840 = vpop.f32.mrb[0].mxu0
    %v841 = vadd.f32 %v761, %v840
    %v842 = vpop.f32.mrb[0].mxu0
    %843 = vmatprep.mubr.bf16.mxu0 0
    %844 = vmatmul.mubr.bf16.gmra.mrb[0].mxu0 %v755
    %v845 = vpop.f32.mrb[0].mxu0
    %v846 = vadd.f32 %v761, %v845
    %v847 = vpop.f32.mrb[0].mxu0
    %v848 = vpop.f32.mrb[0].mxu0
    %v849 = vadd.f32 %v761, %v848
    %v850 = vpop.f32.mrb[0].mxu0
    %851 = vmatprep.mubr.bf16.mxu0 0
    %852 = vmatmul.mubr.bf16.gmra.mrb[0].mxu0 %v756
    %v853 = vpop.f32.mrb[0].mxu0
    %v854 = vadd.f32 %v761, %v853
    %v855 = vpop.f32.mrb[0].mxu0
    %v856 = vpop.f32.mrb[0].mxu0
    %v857 = vadd.f32 %v761, %v856
    %v858 = vpop.f32.mrb[0].mxu0
    %859 = vdwg.mxu0
    %v860 = vmax.f32 %v798, 0.0
    %v861 = vmax.f32 %v801, 0.0
    %v862 = vmax.f32 %v806, 0.0
    %v863 = vmax.f32 %v809, 0.0
    %v864 = vmax.f32 %v814, 0.0
    %v865 = vmax.f32 %v817, 0.0
    %v866 = vmax.f32 %v822, 0.0
    %v867 = vmax.f32 %v825, 0.0
    %v868 = vmax.f32 %v830, 0.0
    %v869 = vmax.f32 %v833, 0.0
    %v870 = vmax.f32 %v838, 0.0
    %v871 = vmax.f32 %v841, 0.0
    %v872 = vmax.f32 %v846, 0.0
    %v873 = vmax.f32 %v849, 0.0
    %v874 = vmax.f32 %v854, 0.0
    %v875 = vmax.f32 %v857, 0.0
    %s876 = scalar_lea.vmem [#allocation8], 256
    %v877 = vld [vmem:[%s876] sm:$0xff]
    %v878 = vld [vmem:[%s876 + $0x8] sm:$0xff]
    %v879 = vld [vmem:[%s876 + $0x10] sm:$0xff]
    %v880 = vld [vmem:[%s876 + $0x18] sm:$0xff]
    %v881 = vld [vmem:[%s876 + $0x20] sm:$0xff]
    %v882 = vld [vmem:[%s876 + $0x28] sm:$0xff]
    %v883 = vld [vmem:[%s876 + $0x30] sm:$0xff]
    %v884 = vld [vmem:[%s876 + $0x38] sm:$0xff]
    %v885 = vld [vmem:[%s876 + $0x40] sm:$0xff]
    %v886 = vld [vmem:[%s876 + $0x48] sm:$0xff]
    %v887 = vld [vmem:[%s876 + $0x50] sm:$0xff]
    %v888 = vld [vmem:[%s876 + $0x58] sm:$0xff]
    %v889 = vld [vmem:[%s876 + $0x60] sm:$0xff]
    %v890 = vld [vmem:[%s876 + $0x68] sm:$0xff]
    %v891 = vld [vmem:[%s876 + $0x70] sm:$0xff]
    %v892 = vld [vmem:[%s876 + $0x78] sm:$0xff]
    %v893 = vpack.c.bf16 %v878, %v877
    %v894 = vpack.c.bf16 %v880, %v879
    %v895 = vpack.c.bf16 %v882, %v881
    %v896 = vpack.c.bf16 %v884, %v883
    %v897 = vpack.c.bf16 %v886, %v885
    %v898 = vpack.c.bf16 %v888, %v887
    %v899 = vpack.c.bf16 %v890, %v889
    %v900 = vpack.c.bf16 %v892, %v891
    %s901 = scalar_lea.vmem %s4, 2
    %v902 = vld [vmem:[%s901] sm:$0x1]
    %v903 = vpack.c.bf16 %v861, %v860
    %v904 = vpack.c.bf16 %v863, %v862
    %v905 = vpack.c.bf16 %v865, %v864
    %v906 = vpack.c.bf16 %v867, %v866
    %v907 = vpack.c.bf16 %v869, %v868
    %v908 = vpack.c.bf16 %v871, %v870
    %v909 = vpack.c.bf16 %v873, %v872
    %v910 = vpack.c.bf16 %v875, %v874
    %911 = vmatprep.subr.bf16.mxu0 0
    %912 = vmatpush1.bf16.msra.mxu0 %v893
    %913 = vmatprep.subr.bf16.mxu0 0
    %914 = vmatpush1.bf16.msra.mxu0 %v894
    %915 = vmatprep.subr.bf16.mxu0 0
    %916 = vmatpush1.bf16.msra.mxu0 %v895
    %917 = vmatprep.subr.bf16.mxu0 0
    %918 = vmatpush1.bf16.msra.mxu0 %v896
    %919 = vmatprep.subr.bf16.mxu0 0
    %920 = vmatpush1.bf16.msra.mxu0 %v897
    %921 = vmatprep.subr.bf16.mxu0 0
    %922 = vmatpush1.bf16.msra.mxu0 %v898
    %923 = vmatprep.subr.bf16.mxu0 0
    %924 = vmatpush1.bf16.msra.mxu0 %v899
    %925 = vmatprep.subr.bf16.mxu0 0
    %926 = vmatpush1.bf16.msra.mxu0 %v900
    %927 = vmatprep.subr.bf16.mxu0 0
    %928 = vmatpush1.bf16.msra.mxu0 0
    %929 = vmatprep.subr.bf16.mxu0 0
    %930 = vmatpush1.bf16.msra.mxu0 0
    %931 = vmatprep.subr.bf16.mxu0 0
    %932 = vmatpush1.bf16.msra.mxu0 0
    %933 = vmatprep.subr.bf16.mxu0 0
    %934 = vmatpush1.bf16.msra.mxu0 0
    %935 = vmatprep.subr.bf16.mxu0 0
    %936 = vmatpush1.bf16.msra.mxu0 0
    %937 = vmatprep.subr.bf16.mxu0 0
    %938 = vmatpush1.bf16.msra.mxu0 0
    %939 = vmatprep.subr.bf16.mxu0 0
    %940 = vmatpush1.bf16.msra.mxu0 0
    %941 = vmatprep.subr.bf16.mxu0 0
    %942 = vmatpush1.bf16.msra.mxu0 0
    %943 = vmatprep.mubr.bf16.mxu0 0
    %944 = vmatmul.mubr.bf16.gmra.mrb[0].mxu0 %v903
    %v945 = vpop.f32.mrb[0].mxu0
    %v946 = vadd.f32 0.0, %v945
    %v947 = vpop.f32.mrb[0].mxu0
    %v948 = vpop.f32.mrb[0].mxu0
    %v949 = vadd.f32 0.0, %v948
    %v950 = vpop.f32.mrb[0].mxu0
    %951 = vmatprep.mubr.bf16.mxu0 0
    %952 = vmatmul.mubr.bf16.gmra.mrb[0].mxu0 %v904
    %v953 = vpop.f32.mrb[0].mxu0
    %v954 = vadd.f32 0.0, %v953
    %v955 = vpop.f32.mrb[0].mxu0
    %v956 = vpop.f32.mrb[0].mxu0
    %v957 = vadd.f32 0.0, %v956
    %v958 = vpop.f32.mrb[0].mxu0
    %959 = vmatprep.mubr.bf16.mxu0 0
    %960 = vmatmul.mubr.bf16.gmra.mrb[0].mxu0 %v905
    %v961 = vpop.f32.mrb[0].mxu0
    %v962 = vadd.f32 0.0, %v961
    %v963 = vpop.f32.mrb[0].mxu0
    %v964 = vpop.f32.mrb[0].mxu0
    %v965 = vadd.f32 0.0, %v964
    %v966 = vpop.f32.mrb[0].mxu0
    %967 = vmatprep.mubr.bf16.mxu0 0
    %968 = vmatmul.mubr.bf16.gmra.mrb[0].mxu0 %v906
    %v969 = vpop.f32.mrb[0].mxu0
    %v970 = vadd.f32 0.0, %v969
    %v971 = vpop.f32.mrb[0].mxu0
    %v972 = vpop.f32.mrb[0].mxu0
    %v973 = vadd.f32 0.0, %v972
    %v974 = vpop.f32.mrb[0].mxu0
    %975 = vmatprep.mubr.bf16.mxu0 0
    %976 = vmatmul.mubr.bf16.gmra.mrb[0].mxu0 %v907
    %v977 = vpop.f32.mrb[0].mxu0
    %v978 = vadd.f32 0.0, %v977
    %v979 = vpop.f32.mrb[0].mxu0
    %v980 = vpop.f32.mrb[0].mxu0
    %v981 = vadd.f32 0.0, %v980
    %v982 = vpop.f32.mrb[0].mxu0
    %983 = vmatprep.mubr.bf16.mxu0 0
    %984 = vmatmul.mubr.bf16.gmra.mrb[0].mxu0 %v908
    %v985 = vpop.f32.mrb[0].mxu0
    %v986 = vadd.f32 0.0, %v985
    %v987 = vpop.f32.mrb[0].mxu0
    %v988 = vpop.f32.mrb[0].mxu0
    %v989 = vadd.f32 0.0, %v988
    %v990 = vpop.f32.mrb[0].mxu0
    %991 = vmatprep.mubr.bf16.mxu0 0
    %992 = vmatmul.mubr.bf16.gmra.mrb[0].mxu0 %v909
    %v993 = vpop.f32.mrb[0].mxu0
    %v994 = vadd.f32 0.0, %v993
    %v995 = vpop.f32.mrb[0].mxu0
    %v996 = vpop.f32.mrb[0].mxu0
    %v997 = vadd.f32 0.0, %v996
    %v998 = vpop.f32.mrb[0].mxu0
    %999 = vmatprep.mubr.bf16.mxu0 0
    %1000 = vmatmul.mubr.bf16.gmra.mrb[0].mxu0 %v910
    %v1001 = vpop.f32.mrb[0].mxu0
    %v1002 = vadd.f32 0.0, %v1001
    %v1003 = vpop.f32.mrb[0].mxu0
    %v1004 = vpop.f32.mrb[0].mxu0
    %v1005 = vadd.f32 0.0, %v1004
    %v1006 = vpop.f32.mrb[0].mxu0
    %1007 = vdwg.mxu0
    %v1008 = vpack.c.bf16 %v949, %v946
    %v1009 = vpack.c.bf16 %v957, %v954
    %v1010 = vpack.c.bf16 %v965, %v962
    %v1011 = vpack.c.bf16 %v973, %v970
    %v1012 = vpack.c.bf16 %v981, %v978
    %v1013 = vpack.c.bf16 %v989, %v986
    %v1014 = vpack.c.bf16 %v997, %v994
    %v1015 = vpack.c.bf16 %v1005, %v1002
    %v1017 = vlaneseq
    %v1018 = vshrl.u32 %v1017, 7
    %v1019 = vsub.s32 0, %v1018
    %v1020 = vrot.slane %v902, %v1019
    %1022 = vmatprep.subr.bf16.mxu0 0
    %1023 = vmatpush1.bf16.msra.mxu0 %v1008
    %1024 = vmatprep.subr.bf16.mxu0 0
    %1025 = vmatpush1.bf16.msra.mxu0 %v1009
    %1026 = vmatprep.subr.bf16.mxu0 0
    %1027 = vmatpush1.bf16.msra.mxu0 %v1010
    %1028 = vmatprep.subr.bf16.mxu0 0
    %1029 = vmatpush1.bf16.msra.mxu0 %v1011
    %1030 = vmatprep.subr.bf16.mxu0 0
    %1031 = vmatpush1.bf16.msra.mxu0 %v1012
    %1032 = vmatprep.subr.bf16.mxu0 0
    %1033 = vmatpush1.bf16.msra.mxu0 %v1013
    %1034 = vmatprep.subr.bf16.mxu0 0
    %1035 = vmatpush1.bf16.msra.mxu0 %v1014
    %1036 = vmatprep.subr.bf16.mxu0 0
    %1037 = vmatpush1.bf16.msra.mxu0 %v1015
    %1038 = vmatprep.subr.bf16.mxu0 0
    %1039 = vmatpush1.bf16.msra.mxu0 0
    %1040 = vmatprep.subr.bf16.mxu0 0
    %1041 = vmatpush1.bf16.msra.mxu0 0
    %1042 = vmatprep.subr.bf16.mxu0 0
    %1043 = vmatpush1.bf16.msra.mxu0 0
    %1044 = vmatprep.subr.bf16.mxu0 0
    %1045 = vmatpush1.bf16.msra.mxu0 0
    %1046 = vmatprep.subr.bf16.mxu0 0
    %1047 = vmatpush1.bf16.msra.mxu0 0
    %1048 = vmatprep.subr.bf16.mxu0 0
    %1049 = vmatpush1.bf16.msra.mxu0 0
    %1050 = vmatprep.subr.bf16.mxu0 0
    %1051 = vmatpush1.bf16.msra.mxu0 0
    %1052 = vmatprep.subr.bf16.mxu0 0
    %1053 = vmatpush1.bf16.msra.mxu0 0
    %1054 = vmatprep.mubr.bf16.mxu0 0
    %1055 = vmatmul.mubr.bf16.gmra.mrb[0].mxu0 %v336
    %v1056 = vpop.f32.mrb[0].mxu0
    %v1057 = vadd.f32 %v1020, %v1056
    %v1058 = vpop.f32.mrb[0].mxu0
    %v1059 = vpop.f32.mrb[0].mxu0
    %v1060 = vadd.f32 %v1020, %v1059
    %v1061 = vpop.f32.mrb[0].mxu0
    %1062 = vmatprep.mubr.bf16.mxu0 0
    %1063 = vmatmul.mubr.bf16.gmra.mrb[0].mxu0 %v337
    %v1064 = vpop.f32.mrb[0].mxu0
    %v1065 = vadd.f32 %v1020, %v1064
    %v1066 = vpop.f32.mrb[0].mxu0
    %v1067 = vpop.f32.mrb[0].mxu0
    %v1068 = vadd.f32 %v1020, %v1067
    %v1069 = vpop.f32.mrb[0].mxu0
    %1070 = vmatprep.mubr.bf16.mxu0 0
    %1071 = vmatmul.mubr.bf16.gmra.mrb[0].mxu0 %v338
    %v1072 = vpop.f32.mrb[0].mxu0
    %v1073 = vadd.f32 %v1020, %v1072
    %v1074 = vpop.f32.mrb[0].mxu0
    %v1075 = vpop.f32.mrb[0].mxu0
    %v1076 = vadd.f32 %v1020, %v1075
    %v1077 = vpop.f32.mrb[0].mxu0
    %1078 = vmatprep.mubr.bf16.mxu0 0
    %1079 = vmatmul.mubr.bf16.gmra.mrb[0].mxu0 %v339
    %v1080 = vpop.f32.mrb[0].mxu0
    %v1081 = vadd.f32 %v1020, %v1080
    %v1082 = vpop.f32.mrb[0].mxu0
    %v1083 = vpop.f32.mrb[0].mxu0
    %v1084 = vadd.f32 %v1020, %v1083
    %v1085 = vpop.f32.mrb[0].mxu0
    %1086 = vmatprep.mubr.bf16.mxu0 0
    %1087 = vmatmul.mubr.bf16.gmra.mrb[0].mxu0 %v340
    %v1088 = vpop.f32.mrb[0].mxu0
    %v1089 = vadd.f32 %v1020, %v1088
    %v1090 = vpop.f32.mrb[0].mxu0
    %v1091 = vpop.f32.mrb[0].mxu0
    %v1092 = vadd.f32 %v1020, %v1091
    %v1093 = vpop.f32.mrb[0].mxu0
    %1094 = vmatprep.mubr.bf16.mxu0 0
    %1095 = vmatmul.mubr.bf16.gmra.mrb[0].mxu0 %v341
    %v1096 = vpop.f32.mrb[0].mxu0
    %v1097 = vadd.f32 %v1020, %v1096
    %v1098 = vpop.f32.mrb[0].mxu0
    %v1099 = vpop.f32.mrb[0].mxu0
    %v1100 = vadd.f32 %v1020, %v1099
    %v1101 = vpop.f32.mrb[0].mxu0
    %1102 = vmatprep.mubr.bf16.mxu0 0
    %1103 = vmatmul.mubr.bf16.gmra.mrb[0].mxu0 %v342
    %v1104 = vpop.f32.mrb[0].mxu0
    %v1105 = vadd.f32 %v1020, %v1104
    %v1106 = vpop.f32.mrb[0].mxu0
    %v1107 = vpop.f32.mrb[0].mxu0
    %v1108 = vadd.f32 %v1020, %v1107
    %v1109 = vpop.f32.mrb[0].mxu0
    %1110 = vmatprep.mubr.bf16.mxu0 0
    %1111 = vmatmul.mubr.bf16.gmra.mrb[0].mxu0 %v343
    %v1112 = vpop.f32.mrb[0].mxu0
    %v1113 = vadd.f32 %v1020, %v1112
    %v1114 = vpop.f32.mrb[0].mxu0
    %v1115 = vpop.f32.mrb[0].mxu0
    %v1116 = vadd.f32 %v1020, %v1115
    %v1117 = vpop.f32.mrb[0].mxu0
    %1118 = vdwg.mxu0
    %1119 = vst [vmem:[#allocation10] sm:$0xff] %v1057
    %1120 = vst [vmem:[#allocation10 + $0x8] sm:$0xff] %v1060
    %1121 = vst [vmem:[#allocation10 + $0x10] sm:$0xff] %v1065
    %1122 = vst [vmem:[#allocation10 + $0x18] sm:$0xff] %v1068
    %1123 = vst [vmem:[#allocation10 + $0x20] sm:$0xff] %v1073
    %1124 = vst [vmem:[#allocation10 + $0x28] sm:$0xff] %v1076
    %1125 = vst [vmem:[#allocation10 + $0x30] sm:$0xff] %v1081
    %1126 = vst [vmem:[#allocation10 + $0x38] sm:$0xff] %v1084
    %1127 = vst [vmem:[#allocation10 + $0x40] sm:$0xff] %v1089
    %1128 = vst [vmem:[#allocation10 + $0x48] sm:$0xff] %v1092
    %1129 = vst [vmem:[#allocation10 + $0x50] sm:$0xff] %v1097
    %1130 = vst [vmem:[#allocation10 + $0x58] sm:$0xff] %v1100
    %1131 = vst [vmem:[#allocation10 + $0x60] sm:$0xff] %v1105
    %1132 = vst [vmem:[#allocation10 + $0x68] sm:$0xff] %v1108
    %1133 = vst [vmem:[#allocation10 + $0x70] sm:$0xff] %v1113
    %1134 = vst [vmem:[#allocation10 + $0x78] sm:$0xff] %v1116
    %v1135 = vmul.f32 %v96, %v80
    %v1136 = vmul.f32 %v97, %v81
    %v1137 = vmul.f32 %v98, %v82
    %v1138 = vmul.f32 %v99, %v83
    %v1139 = vmul.f32 %v100, %v84
    %v1140 = vmul.f32 %v101, %v85
    %v1141 = vmul.f32 %v102, %v86
    %v1142 = vmul.f32 %v103, %v87
    %v1143 = vmul.f32 %v104, %v88
    %v1144 = vmul.f32 %v105, %v89
    %v1145 = vmul.f32 %v106, %v90
    %v1146 = vmul.f32 %v107, %v91
    %v1147 = vmul.f32 %v108, %v92
    %v1148 = vmul.f32 %v109, %v93
    %v1149 = vmul.f32 %v110, %v94
    %v1150 = vmul.f32 %v111, %v95
    %1151 = vmatprep.subr.mxu0 0.0
    %1152 = vmatpush1.msra.mxu0 %v1057
    %1153 = vmatprep.subr.mxu0 0.0
    %1154 = vmatpush1.msra.mxu0 %v1060
    %1155 = vmatprep.subr.mxu0 0.0
    %1156 = vmatpush1.msra.mxu0 %v1065
    %1157 = vmatprep.subr.mxu0 0.0
    %1158 = vmatpush1.msra.mxu0 %v1068
    %1159 = vmatprep.subr.mxu0 0.0
    %1160 = vmatpush1.msra.mxu0 %v1073
    %1161 = vmatprep.subr.mxu0 0.0
    %1162 = vmatpush1.msra.mxu0 %v1076
    %1163 = vmatprep.subr.mxu0 0.0
    %1164 = vmatpush1.msra.mxu0 %v1081
    %1165 = vmatprep.subr.mxu0 0.0
    %1166 = vmatpush1.msra.mxu0 %v1084
    %1167 = vmatprep.subr.mxu0 0.0
    %1168 = vmatpush1.msra.mxu0 %v1089
    %1169 = vmatprep.subr.mxu0 0.0
    %1170 = vmatpush1.msra.mxu0 %v1092
    %1171 = vmatprep.subr.mxu0 0.0
    %1172 = vmatpush1.msra.mxu0 %v1097
    %1173 = vmatprep.subr.mxu0 0.0
    %1174 = vmatpush1.msra.mxu0 %v1100
    %1175 = vmatprep.subr.mxu0 0.0
    %1176 = vmatpush1.msra.mxu0 %v1105
    %1177 = vmatprep.subr.mxu0 0.0
    %1178 = vmatpush1.msra.mxu0 %v1108
    %1179 = vmatprep.subr.mxu0 0.0
    %1180 = vmatpush1.msra.mxu0 %v1113
    %1181 = vmatprep.subr.mxu0 0.0
    %1182 = vmatpush1.msra.mxu0 %v1116
    %1183 = vmatprep.subr.mxu0 0.0
    %1184 = vmatpush1.msra.mxu0 0.0
    %1185 = vmatprep.subr.mxu0 0.0
    %1186 = vmatpush1.msra.mxu0 0.0
    %1187 = vmatprep.subr.mxu0 0.0
    %1188 = vmatpush1.msra.mxu0 0.0
    %1189 = vmatprep.subr.mxu0 0.0
    %1190 = vmatpush1.msra.mxu0 0.0
    %1191 = vmatprep.subr.mxu0 0.0
    %1192 = vmatpush1.msra.mxu0 0.0
    %1193 = vmatprep.subr.mxu0 0.0
    %1194 = vmatpush1.msra.mxu0 0.0
    %1195 = vmatprep.subr.mxu0 0.0
    %1196 = vmatpush1.msra.mxu0 0.0
    %1197 = vmatprep.subr.mxu0 0.0
    %1198 = vmatpush1.msra.mxu0 0.0
    %1199 = vmatprep.subr.mxu0 0.0
    %1200 = vmatpush1.msra.mxu0 0.0
    %1201 = vmatprep.subr.mxu0 0.0
    %1202 = vmatpush1.msra.mxu0 0.0
    %1203 = vmatprep.subr.mxu0 0.0
    %1204 = vmatpush1.msra.mxu0 0.0
    %1205 = vmatprep.subr.mxu0 0.0
    %1206 = vmatpush1.msra.mxu0 0.0
    %1207 = vmatprep.subr.mxu0 0.0
    %1208 = vmatpush1.msra.mxu0 0.0
    %1209 = vmatprep.subr.mxu0 0.0
    %1210 = vmatpush1.msra.mxu0 0.0
    %1211 = vmatprep.subr.mxu0 0.0
    %1212 = vmatpush1.msra.mxu0 0.0
    %1213 = vmatprep.subr.mxu0 0.0
    %1214 = vmatpush1.msra.mxu0 0.0
    %1215 = vmatprep.mubr.f32.mxu0 0.0
    %1216 = vmatmul.mubr.f32.gmra.mrb[0].mxu0 %v1135
    %v1217 = vpop.f32.mrb[0].mxu0
    %v1218 = vadd.f32 0.0, %v1217
    %v1219 = vpop.f32.mrb[0].mxu0
    %1220 = vmatprep.mubr.f32.mxu0 0.0
    %1221 = vmatmul.mubr.f32.gmra.mrb[0].mxu0 %v1136
    %v1222 = vpop.f32.mrb[0].mxu0
    %v1223 = vadd.f32 0.0, %v1222
    %v1224 = vpop.f32.mrb[0].mxu0
    %1225 = vmatprep.mubr.f32.mxu0 0.0
    %1226 = vmatmul.mubr.f32.gmra.mrb[0].mxu0 %v1137
    %v1227 = vpop.f32.mrb[0].mxu0
    %v1228 = vadd.f32 0.0, %v1227
    %v1229 = vpop.f32.mrb[0].mxu0
    %1230 = vmatprep.mubr.f32.mxu0 0.0
    %1231 = vmatmul.mubr.f32.gmra.mrb[0].mxu0 %v1138
    %v1232 = vpop.f32.mrb[0].mxu0
    %v1233 = vadd.f32 0.0, %v1232
    %v1234 = vpop.f32.mrb[0].mxu0
    %1235 = vmatprep.mubr.f32.mxu0 0.0
    %1236 = vmatmul.mubr.f32.gmra.mrb[0].mxu0 %v1139
    %v1237 = vpop.f32.mrb[0].mxu0
    %v1238 = vadd.f32 0.0, %v1237
    %v1239 = vpop.f32.mrb[0].mxu0
    %1240 = vmatprep.mubr.f32.mxu0 0.0
    %1241 = vmatmul.mubr.f32.gmra.mrb[0].mxu0 %v1140
    %v1242 = vpop.f32.mrb[0].mxu0
    %v1243 = vadd.f32 0.0, %v1242
    %v1244 = vpop.f32.mrb[0].mxu0
    %1245 = vmatprep.mubr.f32.mxu0 0.0
    %1246 = vmatmul.mubr.f32.gmra.mrb[0].mxu0 %v1141
    %v1247 = vpop.f32.mrb[0].mxu0
    %v1248 = vadd.f32 0.0, %v1247
    %v1249 = vpop.f32.mrb[0].mxu0
    %1250 = vmatprep.mubr.f32.mxu0 0.0
    %1251 = vmatmul.mubr.f32.gmra.mrb[0].mxu0 %v1142
    %v1252 = vpop.f32.mrb[0].mxu0
    %v1253 = vadd.f32 0.0, %v1252
    %v1254 = vpop.f32.mrb[0].mxu0
    %1255 = vmatprep.mubr.f32.mxu0 0.0
    %1256 = vmatmul.mubr.f32.gmra.mrb[0].mxu0 %v1143
    %v1257 = vpop.f32.mrb[0].mxu0
    %v1258 = vadd.f32 0.0, %v1257
    %v1259 = vpop.f32.mrb[0].mxu0
    %1260 = vmatprep.mubr.f32.mxu0 0.0
    %1261 = vmatmul.mubr.f32.gmra.mrb[0].mxu0 %v1144
    %v1262 = vpop.f32.mrb[0].mxu0
    %v1263 = vadd.f32 0.0, %v1262
    %v1264 = vpop.f32.mrb[0].mxu0
    %1265 = vmatprep.mubr.f32.mxu0 0.0
    %1266 = vmatmul.mubr.f32.gmra.mrb[0].mxu0 %v1145
    %v1267 = vpop.f32.mrb[0].mxu0
    %v1268 = vadd.f32 0.0, %v1267
    %v1269 = vpop.f32.mrb[0].mxu0
    %1270 = vmatprep.mubr.f32.mxu0 0.0
    %1271 = vmatmul.mubr.f32.gmra.mrb[0].mxu0 %v1146
    %v1272 = vpop.f32.mrb[0].mxu0
    %v1273 = vadd.f32 0.0, %v1272
    %v1274 = vpop.f32.mrb[0].mxu0
    %1275 = vmatprep.mubr.f32.mxu0 0.0
    %1276 = vmatmul.mubr.f32.gmra.mrb[0].mxu0 %v1147
    %v1277 = vpop.f32.mrb[0].mxu0
    %v1278 = vadd.f32 0.0, %v1277
    %v1279 = vpop.f32.mrb[0].mxu0
    %1280 = vmatprep.mubr.f32.mxu0 0.0
    %1281 = vmatmul.mubr.f32.gmra.mrb[0].mxu0 %v1148
    %v1282 = vpop.f32.mrb[0].mxu0
    %v1283 = vadd.f32 0.0, %v1282
    %v1284 = vpop.f32.mrb[0].mxu0
    %1285 = vmatprep.mubr.f32.mxu0 0.0
    %1286 = vmatmul.mubr.f32.gmra.mrb[0].mxu0 %v1149
    %v1287 = vpop.f32.mrb[0].mxu0
    %v1288 = vadd.f32 0.0, %v1287
    %v1289 = vpop.f32.mrb[0].mxu0
    %1290 = vmatprep.mubr.f32.mxu0 0.0
    %1291 = vmatmul.mubr.f32.gmra.mrb[0].mxu0 %v1150
    %v1292 = vpop.f32.mrb[0].mxu0
    %v1293 = vadd.f32 0.0, %v1292
    %v1294 = vpop.f32.mrb[0].mxu0
    %1295 = vdwg.mxu0
    %v1296 = vmul.f32 %v1218, 0.9
    %v1297 = vmul.f32 %v1223, 0.9
    %v1298 = vmul.f32 %v1228, 0.9
    %v1299 = vmul.f32 %v1233, 0.9
    %v1300 = vmul.f32 %v1238, 0.9
    %v1301 = vmul.f32 %v1243, 0.9
    %v1302 = vmul.f32 %v1248, 0.9
    %v1303 = vmul.f32 %v1253, 0.9
    %v1304 = vmul.f32 %v1258, 0.9
    %v1305 = vmul.f32 %v1263, 0.9
    %v1306 = vmul.f32 %v1268, 0.9
    %v1307 = vmul.f32 %v1273, 0.9
    %v1308 = vmul.f32 %v1278, 0.9
    %v1309 = vmul.f32 %v1283, 0.9
    %v1310 = vmul.f32 %v1288, 0.9
    %v1311 = vmul.f32 %v1293, 0.9
    %v1312 = vmul.f32 %v1057, 0.1
    %v1313 = vmul.f32 %v1060, 0.1
    %v1314 = vmul.f32 %v1065, 0.1
    %v1315 = vmul.f32 %v1068, 0.1
    %v1316 = vmul.f32 %v1073, 0.1
    %v1317 = vmul.f32 %v1076, 0.1
    %v1318 = vmul.f32 %v1081, 0.1
    %v1319 = vmul.f32 %v1084, 0.1
    %v1320 = vmul.f32 %v1089, 0.1
    %v1321 = vmul.f32 %v1092, 0.1
    %v1322 = vmul.f32 %v1097, 0.1
    %v1323 = vmul.f32 %v1100, 0.1
    %v1324 = vmul.f32 %v1105, 0.1
    %v1325 = vmul.f32 %v1108, 0.1
    %v1326 = vmul.f32 %v1113, 0.1
    %v1327 = vmul.f32 %v1116, 0.1
    %v1328 = vadd.f32 %v1296, %v1312
    %v1329 = vadd.f32 %v1297, %v1313
    %v1330 = vadd.f32 %v1298, %v1314
    %v1331 = vadd.f32 %v1299, %v1315
    %v1332 = vadd.f32 %v1300, %v1316
    %v1333 = vadd.f32 %v1301, %v1317
    %v1334 = vadd.f32 %v1302, %v1318
    %v1335 = vadd.f32 %v1303, %v1319
    %v1336 = vadd.f32 %v1304, %v1320
    %v1337 = vadd.f32 %v1305, %v1321
    %v1338 = vadd.f32 %v1306, %v1322
    %v1339 = vadd.f32 %v1307, %v1323
    %v1340 = vadd.f32 %v1308, %v1324
    %v1341 = vadd.f32 %v1309, %v1325
    %v1342 = vadd.f32 %v1310, %v1326
    %v1343 = vadd.f32 %v1311, %v1327
    %1344 = vst [vmem:[#allocation11] sm:$0xff] %v1328
    %1345 = vst [vmem:[#allocation11 + $0x8] sm:$0xff] %v1329
    %1346 = vst [vmem:[#allocation11 + $0x10] sm:$0xff] %v1330
    %1347 = vst [vmem:[#allocation11 + $0x18] sm:$0xff] %v1331
    %1348 = vst [vmem:[#allocation11 + $0x20] sm:$0xff] %v1332
    %1349 = vst [vmem:[#allocation11 + $0x28] sm:$0xff] %v1333
    %1350 = vst [vmem:[#allocation11 + $0x30] sm:$0xff] %v1334
    %1351 = vst [vmem:[#allocation11 + $0x38] sm:$0xff] %v1335
    %1352 = vst [vmem:[#allocation11 + $0x40] sm:$0xff] %v1336
    %1353 = vst [vmem:[#allocation11 + $0x48] sm:$0xff] %v1337
    %1354 = vst [vmem:[#allocation11 + $0x50] sm:$0xff] %v1338
    %1355 = vst [vmem:[#allocation11 + $0x58] sm:$0xff] %v1339
    %1356 = vst [vmem:[#allocation11 + $0x60] sm:$0xff] %v1340
    %1357 = vst [vmem:[#allocation11 + $0x68] sm:$0xff] %v1341
    %1358 = vst [vmem:[#allocation11 + $0x70] sm:$0xff] %v1342
    %1359 = vst [vmem:[#allocation11 + $0x78] sm:$0xff] %v1343
    // Predicated region
    $region38: #{tpu_custom_call.1} parent=1 // pred_check
      _
    $region39: #{tpu_custom_call.1} parent=1 // pred_check_branch
      %1361 = sbr.rel (0) target = $region41
    $region40: #{tpu_custom_call.1} parent=1 // pred_region
      %s1363 = ssub.s32 2048, 2048
      %1364 = vsyncadd [#allocation4], %s1363
      %s1365 = sshll.u32 [#allocation10], 4
      %s1366 = int_to_ptr.vmem [resolvable:$true] %s1365
      %1371 = dma.vmem_to_hbm [thread:$0]  %s1366, 2048, %s5, [#allocation4], 128, 128, 8
    $region41: #{tpu_custom_call.1} parent=1 // pred_fallthru
      _
    // Predicated region
    $region42: #{tpu_custom_call.1} parent=1 // pred_check
      _
    $region43: #{tpu_custom_call.1} parent=1 // pred_check_branch
      %1373 = sbr.rel (0) target = $region45
    $region44: #{tpu_custom_call.1} parent=1 // pred_region
      %s1375 = ssub.s32 2048, 2048
      %1376 = vsyncadd [#allocation12], %s1375
      %s1377 = sshll.u32 [#allocation11], 4
      %s1378 = int_to_ptr.vmem [resolvable:$true] %s1377
      %1383 = dma.vmem_to_hbm [thread:$0]  %s1378, 2048, %s6, [#allocation12], 128, 128, 8
    $region45: #{tpu_custom_call.1} parent=1 // pred_fallthru
      _
    // Predicated region
    $region46: #{tpu_custom_call.1} parent=1 // pred_check
      _
    $region47: #{tpu_custom_call.1} parent=1 // pred_check_branch
      %1385 = sbr.rel (0) target = $region49
    $region48: #{tpu_custom_call.1} parent=1 // pred_region
      %1386 = dma.done [#allocation4], 2048
    $region49: #{tpu_custom_call.1} parent=1 // pred_fallthru
      _
    // Predicated region
    $region50: #{tpu_custom_call.1} parent=1 // pred_check
      _
    $region51: #{tpu_custom_call.1} parent=1 // pred_check_branch
      %1388 = sbr.rel (0) target = $region53
    $region52: #{tpu_custom_call.1} parent=1 // pred_region
      %1389 = dma.done [#allocation12], 2048
    $region53: #{tpu_custom_call.1} parent=1 // pred_fallthru
      _
    %1390 = vsyncpa [#allocation3], 1
    %1391 = vsyncpa [#allocation6], 1
    %1392 = vsyncpa [#allocation9], 1
    %1393 = vsyncpa [#allocation4], 1
    %1394 = vsyncpa [#allocation12], 1

</llo_original>
